<compile_context>
chip_gen: v7x
topology: tpu7x:2x2x1
jax: 0.10.0
libtpu: 0.0.40
codegen_flags: <defaults>
</compile_context>

<pallas_src>
import functools

import jax
import jax.numpy as jnp
from jax.experimental import pallas as pl
from jax.experimental.pallas import tpu as pltpu

LN_EPS = 1e-5  # PyTorch nn.LayerNorm default eps


def _round_up(x, m):
    return ((x + m - 1) // m) * m


def _tile_bytes(shape, itemsize):
    dims = list(shape)
    if len(dims) == 1:
        dims = [1] + dims
    dims[-1] = _round_up(dims[-1], 128)
    dims[-2] = _round_up(dims[-2], 8)
    n = 1
    for d in dims:
        n *= d
    return n * itemsize


# --------------------------------------------------------------------------
# Kernel
# --------------------------------------------------------------------------
def critic_kernel(
    obs_ref, act_ref,
    # trunk params
    wt_ref, bt_ref, g_ref, be_ref,
    # fused layer-1 (both heads, column-concatenated)
    w1h_ref, w1a_ref, b1_ref,       # (feat_pad, 2H), (action_dim, 2H), (1, 2H)
    # stacked per-head layer-2 / layer-3
    w2_ref, b2_ref,                 # (2, H, H), (2, 1, H)
    w3_ref, b3_ref,                 # (2, H, 1), (2, 1, 1)
    # output
    out_ref,                        # (bb, 2): col 0 = q1, col 1 = q2
    # scratch
    acc_ref,                        # (bb, feat_pad) f32 trunk accumulator
    *, true_feat, true_repr, kb,
):
    k = pl.program_id(1)

    @pl.when(k == 0)
    def _init():
        acc_ref[...] = jnp.zeros_like(acc_ref)

    # ---- K-tiled trunk matmul (f32 accumulate). Mask the partial last K tile
    #      (obs columns beyond repr_dim are undefined OOB reads). ----
    obs_tile = obs_ref[...]
    if true_repr % kb != 0:
        col = jax.lax.broadcasted_iota(jnp.int32, obs_tile.shape, 1) + k * kb
        obs_tile = jnp.where(col < true_repr, obs_tile, jnp.zeros_like(obs_tile))
    acc_ref[...] += jnp.dot(obs_tile, wt_ref[...],
                            preferred_element_type=jnp.float32)

    @pl.when(k == pl.num_programs(1) - 1)
    def _finish():
        h = acc_ref[...] + bt_ref[...]          # padded lanes are exactly 0

        # ---- LayerNorm (two-pass, masked to the true feature width) + Tanh ----
        inv_n = 1.0 / true_feat
        mean = jnp.sum(h, axis=-1, keepdims=True) * inv_n
        lane = jax.lax.broadcasted_iota(jnp.int32, h.shape, 1)
        d = jnp.where(lane < true_feat, h - mean, 0.0)
        var = jnp.sum(d * d, axis=-1, keepdims=True) * inv_n
        hn = jnp.tanh(d * jax.lax.rsqrt(var + LN_EPS) * g_ref[...] + be_ref[...])

        # ---- layer 1: fused (feat_pad, 2H) MXU pass for both heads ----
        z = jnp.dot(hn, w1h_ref[...],
                    preferred_element_type=jnp.float32) + b1_ref[...]

        # torch.cat([h, action]) handled algebraically: tiny-K action part.
        two_h = z.shape[-1]
        act = act_ref[...]
        if two_h > 256:
            # Wide heads: a K=action_dim MXU pass is cheaper than VPU rank-1 updates.
            z = z + jnp.dot(act, w1a_ref[...], preferred_element_type=jnp.float32)
        else:
            w1a = w1a_ref[...]
            for j in range(act.shape[-1]):      # static unroll, action_dim small
                z = z + act[:, j:j + 1] * w1a[j:j + 1, :]
        z = jnp.maximum(z, 0.0)

        # ---- layers 2 & 3: per-head (H,H) / (H,1) matmuls (no block-diag zeros) ----
        hdim = two_h // 2
        z1, z2 = z[:, :hdim], z[:, hdim:]
        y1 = jnp.maximum(jnp.dot(z1, w2_ref[0],
                                 preferred_element_type=jnp.float32) + b2_ref[0], 0.0)
        y2 = jnp.maximum(jnp.dot(z2, w2_ref[1],
                                 preferred_element_type=jnp.float32) + b2_ref[1], 0.0)
        q1 = jnp.dot(y1, w3_ref[0], preferred_element_type=jnp.float32) + b3_ref[0]
        q2 = jnp.dot(y2, w3_ref[1], preferred_element_type=jnp.float32) + b3_ref[1]
        out_ref[...] = jnp.concatenate([q1, q2], axis=-1)


# --------------------------------------------------------------------------
# Wrapper
# --------------------------------------------------------------------------
def critic_forward(obs, action, packed, *, trunk_dtype=jnp.float32, force_kb=None):
    """obs (B, repr_dim) f32, action (B, action_dim) f32 -> (q1, q2), each (B, 1)."""
    params = packed["params"]
    feat = packed["feature_dim"]
    (wt, bt, ln_g, ln_b, w1h, w1a, b1, w2s, b2s, w3s, b3s) = params

    B, repr_dim = obs.shape
    action_dim = action.shape[1]
    feat_pad = wt.shape[1]
    two_h = w1h.shape[1]
    hidden = two_h // 2

    # ---- K (repr_dim) tiling: generation-aware upper bound on the tile ----
    kb_max = 2048                        # safe for v7x's 64 MiB VMEM
    try:
        if pltpu.get_tpu_info().vmem_capacity_bytes >= (100 << 20):
            kb_max = 4096                # v5e/v6e (128 MiB): fewer grid steps
    except Exception:
        pass
    if force_kb is not None:
        kb = _round_up(int(force_kb), 128)
    elif repr_dim <= kb_max:
        kb = repr_dim                    # single full-extent K block (always legal)
    else:
        kb = kb_max                      # multiple of 128; masked partial last tile
    nk = -(-repr_dim // kb)
    k_pad = nk * kb
    wt_k = wt if k_pad == repr_dim else jnp.pad(wt, ((0, k_pad - repr_dim), (0, 0)))

    # ---- batch tiling: cap bb so nb >= 2 on large batches (v7x megacore) ----
    bb = 128 if B > 128 else _round_up(B, 8)
    b_pad = _round_up(B, bb)
    nb = b_pad // bb
    obs_p = obs if b_pad == B else jnp.pad(obs, ((0, b_pad - B), (0, 0)))
    act_p = action if b_pad == B else jnp.pad(action, ((0, b_pad - B), (0, 0)))

    # bf16 trunk inputs halve the dominant HBM traffic; accumulation stays f32.
    obs_p = obs_p.astype(trunk_dtype)
    wt_k = wt_k.astype(trunk_dtype)

    kernel = functools.partial(critic_kernel, true_feat=feat,
                               true_repr=repr_dim, kb=kb)

    consts = (bt, ln_g, ln_b, w1h, w1a, b1, w2s, b2s, w3s, b3s)

    def build_in_specs(single_buffer):
        def const_spec(arr):
            n = arr.ndim

            def idx(b, k):
                return (0,) * n

            if single_buffer:
                return pl.BlockSpec(arr.shape, idx, pipeline_mode=pl.Buffered(1))
            return pl.BlockSpec(arr.shape, idx)

        return ([pl.BlockSpec((bb, kb), lambda b, k: (b, k)),            # obs
                 pl.BlockSpec((bb, action_dim), lambda b, k: (b, 0)),    # action
                 pl.BlockSpec((kb, feat_pad), lambda b, k: (k, 0))]      # trunk W
                + [const_spec(a) for a in consts])

    def vmem_limit(single_buffer):
        cbuf = 1 if single_buffer else 2
        need = 2 * _tile_bytes((bb, kb), obs_p.dtype.itemsize)
        need += 2 * _tile_bytes((bb, action_dim), 4)
        need += 2 * _tile_bytes((kb, feat_pad), wt_k.dtype.itemsize)
        need += cbuf * sum(_tile_bytes(a.shape, a.dtype.itemsize) for a in consts)
        need += _tile_bytes((bb, feat_pad), 4)       # accumulator scratch
        need += 2 * _tile_bytes((bb, 2), 4)          # output
        lim = max(16 << 20, min(64 << 20, 2 * need + (2 << 20)))
        return int(max(lim, need + (2 << 20)))

    flops = 2 * b_pad * (repr_dim * feat + feat_pad * two_h + action_dim * two_h
                         + 2 * hidden * hidden + 2 * hidden)
    bytes_accessed = (obs_p.size * obs_p.dtype.itemsize
                      + act_p.size * 4
                      + wt_k.size * wt_k.dtype.itemsize
                      + sum(a.size * a.dtype.itemsize for a in consts)
                      + b_pad * 2 * 4)
    cost = pl.CostEstimate(flops=int(flops),
                           transcendentals=int(b_pad * feat_pad),
                           bytes_accessed=int(bytes_accessed))

    def run(single_buffer):
        return pl.pallas_call(
            kernel,
            out_shape=jax.ShapeDtypeStruct((b_pad, 2), jnp.float32),
            grid_spec=pltpu.PrefetchScalarGridSpec(
                num_scalar_prefetch=0,
                grid=(nb, nk),
                in_specs=build_in_specs(single_buffer),
                out_specs=pl.BlockSpec((bb, 2), lambda b, k: (b, 0)),
                scratch_shapes=[pltpu.VMEM((bb, feat_pad), jnp.float32)]),
            compiler_params=pltpu.CompilerParams(
                dimension_semantics=("parallel", "arbitrary"),
                vmem_limit_bytes=vmem_limit(single_buffer)),
            cost_estimate=cost,
        )(obs_p, act_p, wt_k, *consts)

    try:
        out = run(single_buffer=hasattr(pl, "Buffered"))
    except Exception:
        out = run(single_buffer=False)   # fallback: default double buffering

    out = out[:B]
    return out[:, 0:1], out[:, 1:2]


# --------------------------------------------------------------------------
# Parameter init (mirrors the PyTorch module) + packing for the kernel
# --------------------------------------------------------------------------
def init_params(key, repr_dim, feature_dim, action_dim, hidden_dim):
    """Orthogonal weights / zero biases (like utils.weight_init); stored (in, out)."""
    orth = jax.nn.initializers.orthogonal()
    ks = jax.random.split(key, 7)

    def linear(k, d_in, d_out):
        w = orth(k, (d_out, d_in), jnp.float32).T
        return w, jnp.zeros((1, d_out), jnp.float32)

    wt, bt = linear(ks[0], repr_dim, feature_dim)

    def head(k1, k2, k3):
        w1, b1 = linear(k1, feature_dim + action_dim, hidden_dim)
        w2, b2 = linear(k2, hidden_dim, hidden_dim)
        w3, b3 = linear(k3, hidden_dim, 1)
        return dict(w1=w1, b1=b1, w2=w2, b2=b2, w3=w3, b3=b3)

    return dict(wt=wt, bt=bt,
                ln_g=jnp.ones((1, feature_dim), jnp.float32),
                ln_b=jnp.zeros((1, feature_dim), jnp.float32),
                q1=head(ks[1], ks[2], ks[3]),
                q2=head(ks[4], ks[5], ks[6]))


def pack_params(nat):
    """Pad feature_dim to a lane-dense multiple of 128 and stack the two heads."""
    feat = nat["wt"].shape[1]
    feat_pad = _round_up(feat, 128)
    pad_f = feat_pad - feat
    q1, q2 = nat["q1"], nat["q2"]

    wt = jnp.pad(nat["wt"], ((0, 0), (0, pad_f)))
    bt = jnp.pad(nat["bt"], ((0, 0), (0, pad_f)))
    ln_g = jnp.pad(nat["ln_g"], ((0, 0), (0, pad_f)))   # padded gamma = 0 -> tanh(0)=0
    ln_b = jnp.pad(nat["ln_b"], ((0, 0), (0, pad_f)))

    w1h = jnp.concatenate([q1["w1"][:feat], q2["w1"][:feat]], axis=1)   # (feat, 2H)
    w1h = jnp.pad(w1h, ((0, pad_f), (0, 0)))                            # padded rows = 0
    w1a = jnp.concatenate([q1["w1"][feat:], q2["w1"][feat:]], axis=1)   # (act, 2H)
    b1 = jnp.concatenate([q1["b1"], q2["b1"]], axis=1)                  # (1, 2H)

    w2s = jnp.stack([q1["w2"], q2["w2"]])                               # (2, H, H)
    b2s = jnp.stack([q1["b2"], q2["b2"]])                               # (2, 1, H)
    w3s = jnp.stack([q1["w3"], q2["w3"]])                               # (2, H, 1)
    b3s = jnp.stack([q1["b3"], q2["b3"]])                               # (2, 1, 1)

    return dict(params=(wt, bt, ln_g, ln_b, w1h, w1a, b1, w2s, b2s, w3s, b3s),
                feature_dim=feat)


# --------------------------------------------------------------------------
# Pure-JAX reference (PyTorch semantics) for correctness checking
# --------------------------------------------------------------------------
def critic_reference(obs, action, nat):
    h = obs @ nat["wt"] + nat["bt"]
    mean = h.mean(-1, keepdims=True)
    var = ((h - mean) ** 2).mean(-1, keepdims=True)
    h = (h - mean) / jnp.sqrt(var + LN_EPS)
    h = jnp.tanh(h * nat["ln_g"] + nat["ln_b"])
    ha = jnp.concatenate([h, action], axis=-1)

    def head(p):
        z = jnp.maximum(ha @ p["w1"] + p["b1"], 0.0)
        z = jnp.maximum(z @ p["w2"] + p["b2"], 0.0)
        return z @ p["w3"] + p["b3"]

    return head(nat["q1"]), head(nat["q2"])


# --------------------------------------------------------------------------
if __name__ == "__main__":
    def check(B, repr_dim, feature_dim, action_dim, hidden_dim,
              trunk_dtype, force_kb, atol, rtol, key):
        k_obs, k_act, k_par = jax.random.split(key, 3)
        obs = jax.random.normal(k_obs, (B, repr_dim), jnp.float32)
        action = jax.random.normal(k_act, (B, action_dim), jnp.float32)
        nat = init_params(k_par, repr_dim, feature_dim, action_dim, hidden_dim)
        packed = pack_params(nat)
        q1, q2 = critic_forward(obs, action, packed,
                                trunk_dtype=trunk_dtype, force_kb=force_kb)
        jax.block_until_ready((q1, q2))
        q1r, q2r = critic_reference(obs, action, nat)
        assert q1.shape == (B, 1) and q2.shape == (B, 1)
        assert jnp.allclose(q1, q1r, atol=atol, rtol=rtol), \
            f"q1 mismatch: {float(jnp.max(jnp.abs(q1 - q1r)))}"
        assert jnp.allclose(q2, q2r, atol=atol, rtol=rtol), \
            f"q2 mismatch: {float(jnp.max(jnp.abs(q2 - q2r)))}"

    key = jax.random.PRNGKey(0)
    k1, k2, k3 = jax.random.split(key, 3)

    # 1) Small config, f32 trunk, single full-extent K block (tight tolerance).
    check(8, 32, 64, 4, 64, jnp.float32, None, 1e-4, 1e-4, k1)
    # 2) K-tiled config with masked partial last K tile (300 over kb=128),
    #    feature_dim padding (50 -> 128) and MXU action path (2H = 512), f32.
    check(16, 300, 50, 6, 256, jnp.float32, 128, 1e-3, 1e-3, k2)
    # 3) Same config with bf16 trunk inputs (halved HBM traffic), loose tolerance.
    check(16, 300, 50, 6, 256, jnp.bfloat16, 128, 1e-1, 5e-2, k3)

    print("KERNEL_OK")
</pallas_src>

<mosaic_0001>
module attributes {stable_mosaic.version = 11 : i64} {
  func.func @critic_kernel(%arg0: i32, %arg1: i32, %arg2: memref<8x32xf32, #tpu.memory_space<vmem>>, %arg3: memref<8x4xf32, #tpu.memory_space<vmem>>, %arg4: memref<32x128xf32, #tpu.memory_space<vmem>>, %arg5: memref<1x128xf32, #tpu.memory_space<vmem>>, %arg6: memref<1x128xf32, #tpu.memory_space<vmem>>, %arg7: memref<1x128xf32, #tpu.memory_space<vmem>>, %arg8: memref<128x128xf32, #tpu.memory_space<vmem>>, %arg9: memref<4x128xf32, #tpu.memory_space<vmem>>, %arg10: memref<1x128xf32, #tpu.memory_space<vmem>>, %arg11: memref<2x64x64xf32, #tpu.memory_space<vmem>>, %arg12: memref<2x1x64xf32, #tpu.memory_space<vmem>>, %arg13: memref<2x64x1xf32, #tpu.memory_space<vmem>>, %arg14: memref<2x1x1xf32, #tpu.memory_space<vmem>>, %arg15: memref<8x2xf32, #tpu.memory_space<vmem>>, %arg16: memref<8x128xf32, #tpu.memory_space<vmem>>) attributes {dimension_semantics = [#tpu.dimension_semantics<parallel>, #tpu.dimension_semantics<arbitrary>], iteration_bounds = array<i64: 1, 1>, scalar_prefetch = 0 : i64, scratch_operands = 1 : i64, tpu.core_type = #tpu.core_type<tc>, window_params = [{transform_indices = @transform_0, window_bounds = array<i64: 8, 32>}, {transform_indices = @transform_1, window_bounds = array<i64: 8, 4>}, {transform_indices = @transform_2, window_bounds = array<i64: 32, 128>}, {pipeline_mode = #tpu.pipeline_mode<synchronous>, transform_indices = @transform_3, window_bounds = array<i64: 1, 128>}, {pipeline_mode = #tpu.pipeline_mode<synchronous>, transform_indices = @transform_4, window_bounds = array<i64: 1, 128>}, {pipeline_mode = #tpu.pipeline_mode<synchronous>, transform_indices = @transform_5, window_bounds = array<i64: 1, 128>}, {pipeline_mode = #tpu.pipeline_mode<synchronous>, transform_indices = @transform_6, window_bounds = array<i64: 128, 128>}, {pipeline_mode = #tpu.pipeline_mode<synchronous>, transform_indices = @transform_7, window_bounds = array<i64: 4, 128>}, {pipeline_mode = #tpu.pipeline_mode<synchronous>, transform_indices = @transform_8, window_bounds = array<i64: 1, 128>}, {pipeline_mode = #tpu.pipeline_mode<synchronous>, transform_indices = @transform_9, window_bounds = array<i64: 2, 64, 64>}, {pipeline_mode = #tpu.pipeline_mode<synchronous>, transform_indices = @transform_10, window_bounds = array<i64: 2, 1, 64>}, {pipeline_mode = #tpu.pipeline_mode<synchronous>, transform_indices = @transform_11, window_bounds = array<i64: 2, 64, 1>}, {pipeline_mode = #tpu.pipeline_mode<synchronous>, transform_indices = @transform_12, window_bounds = array<i64: 2, 1, 1>}, {transform_indices = @transform_13, window_bounds = array<i64: 8, 2>}]} {
    %c0_i32 = arith.constant 0 : i32
    %0 = arith.cmpi eq, %arg1, %c0_i32 : i32
    %1 = arith.extui %0 : i1 to i32
    %c0_i32_0 = arith.constant 0 : i32
    %2 = arith.cmpi ne, %1, %c0_i32_0 : i32
    scf.if %2 {
      %cst_10 = arith.constant 0.000000e+00 : f32
      %12 = vector.broadcast %cst_10 : f32 to vector<8x128xf32>
      %c0_11 = arith.constant 0 : index
      %c0_12 = arith.constant 0 : index
      %13 = vector.load %arg16[%c0_11, %c0_12] : memref<8x128xf32, #tpu.memory_space<vmem>>, vector<8x128xf32>
      tpu.vector_store %arg16[%c0_11, %c0_12], %12 {strides = array<i32>} : memref<8x128xf32, #tpu.memory_space<vmem>>, vector<8x128xf32>,
    } else {
    }
    %c0 = arith.constant 0 : index
    %c0_1 = arith.constant 0 : index
    %3 = vector.load %arg2[%c0, %c0_1] : memref<8x32xf32, #tpu.memory_space<vmem>>, vector<8x32xf32>
    %c0_2 = arith.constant 0 : index
    %c0_3 = arith.constant 0 : index
    %4 = vector.load %arg16[%c0_2, %c0_3] : memref<8x128xf32, #tpu.memory_space<vmem>>, vector<8x128xf32>
    %c0_4 = arith.constant 0 : index
    %c0_5 = arith.constant 0 : index
    %5 = vector.load %arg4[%c0_4, %c0_5] : memref<32x128xf32, #tpu.memory_space<vmem>>, vector<32x128xf32>
    %cst = arith.constant dense<0.000000e+00> : vector<8x128xf32>
    %6 = tpu.matmul %3, %5, %cst {dimension_numbers = #tpu.dot_dimension_numbers<[1], [0], [0], [1], [0, 0, 1, 1], [], []>} : vector<8x32xf32>, vector<32x128xf32>, vector<8x128xf32> -> vector<8x128xf32>
    %7 = arith.addf %4, %6 : vector<8x128xf32>
    %c0_6 = arith.constant 0 : index
    %c0_7 = arith.constant 0 : index
    %8 = vector.load %arg16[%c0_6, %c0_7] : memref<8x128xf32, #tpu.memory_space<vmem>>, vector<8x128xf32>
    tpu.vector_store %arg16[%c0_6, %c0_7], %7 {strides = array<i32>} : memref<8x128xf32, #tpu.memory_space<vmem>>, vector<8x128xf32>,
    %c0_i32_8 = arith.constant 0 : i32
    %9 = arith.cmpi eq, %arg1, %c0_i32_8 : i32
    %10 = arith.extui %9 : i1 to i32
    %c0_i32_9 = arith.constant 0 : i32
    %11 = arith.cmpi ne, %10, %c0_i32_9 : i32
    scf.if %11 {
      %c0_10 = arith.constant 0 : index
      %c0_11 = arith.constant 0 : index
      %12 = vector.load %arg16[%c0_10, %c0_11] : memref<8x128xf32, #tpu.memory_space<vmem>>, vector<8x128xf32>
      %c0_12 = arith.constant 0 : index
      %c0_13 = arith.constant 0 : index
      %13 = vector.load %arg5[%c0_12, %c0_13] : memref<1x128xf32, #tpu.memory_space<vmem>>, vector<1x128xf32>
      %14 = vector.broadcast %13 : vector<1x128xf32> to vector<8x128xf32>
      %15 = arith.addf %12, %14 : vector<8x128xf32>
      %cst_14 = arith.constant dense<0.000000e+00> : vector<8xf32>
      %16 = vector.multi_reduction <add>, %15, %cst_14 [1] : vector<8x128xf32> to vector<8xf32>
      %17 = vector.shape_cast %16 : vector<8xf32> to vector<8x1xf32>
      %cst_15 = arith.constant 1.562500e-02 : f32
      %18 = vector.broadcast %cst_15 : f32 to vector<8x1xf32>
      %19 = arith.mulf %17, %18 : vector<8x1xf32>
      %20 = tpu.iota {dimensions = array<i32: 1>} : vector<8x128xi32>
      %c64_i32 = arith.constant 64 : i32
      %21 = vector.broadcast %c64_i32 : i32 to vector<8x128xi32>
      %22 = arith.cmpi slt, %20, %21 : vector<8x128xi32>
      %23 = vector.broadcast %19 : vector<8x1xf32> to vector<8x128xf32>
      %24 = arith.subf %15, %23 : vector<8x128xf32>
      %cst_16 = arith.constant 0.000000e+00 : f32
      %25 = vector.broadcast %cst_16 : f32 to vector<8x128xf32>
      %26 = arith.select %22, %24, %25 : vector<8x128xi1>, vector<8x128xf32>
      %27 = arith.mulf %26, %26 : vector<8x128xf32>
      %cst_17 = arith.constant dense<0.000000e+00> : vector<8xf32>
      %28 = vector.multi_reduction <add>, %27, %cst_17 [1] : vector<8x128xf32> to vector<8xf32>
      %29 = vector.shape_cast %28 : vector<8xf32> to vector<8x1xf32>
      %cst_18 = arith.constant 1.562500e-02 : f32
      %30 = vector.broadcast %cst_18 : f32 to vector<8x1xf32>
      %31 = arith.mulf %29, %30 : vector<8x1xf32>
      %cst_19 = arith.constant 9.99999974E-6 : f32
      %32 = vector.broadcast %cst_19 : f32 to vector<8x1xf32>
      %33 = arith.addf %31, %32 : vector<8x1xf32>
      %34 = math.rsqrt %33 : vector<8x1xf32>
      %35 = vector.broadcast %34 : vector<8x1xf32> to vector<8x128xf32>
      %36 = arith.mulf %26, %35 : vector<8x128xf32>
      %c0_20 = arith.constant 0 : index
      %c0_21 = arith.constant 0 : index
      %37 = vector.load %arg6[%c0_20, %c0_21] : memref<1x128xf32, #tpu.memory_space<vmem>>, vector<1x128xf32>
      %38 = vector.broadcast %37 : vector<1x128xf32> to vector<8x128xf32>
      %39 = arith.mulf %36, %38 : vector<8x128xf32>
      %c0_22 = arith.constant 0 : index
      %c0_23 = arith.constant 0 : index
      %40 = vector.load %arg7[%c0_22, %c0_23] : memref<1x128xf32, #tpu.memory_space<vmem>>, vector<1x128xf32>
      %41 = vector.broadcast %40 : vector<1x128xf32> to vector<8x128xf32>
      %42 = arith.addf %39, %41 : vector<8x128xf32>
      %43 = math.tanh %42 : vector<8x128xf32>
      %c0_24 = arith.constant 0 : index
      %c0_25 = arith.constant 0 : index
      %44 = vector.load %arg8[%c0_24, %c0_25] : memref<128x128xf32, #tpu.memory_space<vmem>>, vector<128x128xf32>
      %cst_26 = arith.constant dense<0.000000e+00> : vector<8x128xf32>
      %45 = tpu.matmul %43, %44, %cst_26 {dimension_numbers = #tpu.dot_dimension_numbers<[1], [0], [0], [1], [0, 0, 1, 1], [], []>} : vector<8x128xf32>, vector<128x128xf32>, vector<8x128xf32> -> vector<8x128xf32>
      %c0_27 = arith.constant 0 : index
      %c0_28 = arith.constant 0 : index
      %46 = vector.load %arg10[%c0_27, %c0_28] : memref<1x128xf32, #tpu.memory_space<vmem>>, vector<1x128xf32>
      %47 = vector.broadcast %46 : vector<1x128xf32> to vector<8x128xf32>
      %48 = arith.addf %45, %47 : vector<8x128xf32>
      %c0_29 = arith.constant 0 : index
      %c0_30 = arith.constant 0 : index
      %49 = vector.load %arg3[%c0_29, %c0_30] : memref<8x4xf32, #tpu.memory_space<vmem>>, vector<8x4xf32>
      %c0_31 = arith.constant 0 : index
      %c0_32 = arith.constant 0 : index
      %50 = vector.load %arg9[%c0_31, %c0_32] : memref<4x128xf32, #tpu.memory_space<vmem>>, vector<4x128xf32>
      %51 = vector.extract_strided_slice %49 {offsets = [0, 0], sizes = [8, 1], strides = [1, 1]} : vector<8x4xf32> to vector<8x1xf32>
      %52 = vector.extract_strided_slice %50 {offsets = [0, 0], sizes = [1, 128], strides = [1, 1]} : vector<4x128xf32> to vector<1x128xf32>
      %53 = vector.broadcast %51 : vector<8x1xf32> to vector<8x128xf32>
      %54 = vector.broadcast %52 : vector<1x128xf32> to vector<8x128xf32>
      %55 = arith.mulf %53, %54 : vector<8x128xf32>
      %56 = arith.addf %48, %55 : vector<8x128xf32>
      %57 = vector.extract_strided_slice %49 {offsets = [0, 1], sizes = [8, 1], strides = [1, 1]} : vector<8x4xf32> to vector<8x1xf32>
      %58 = vector.extract_strided_slice %50 {offsets = [1, 0], sizes = [1, 128], strides = [1, 1]} : vector<4x128xf32> to vector<1x128xf32>
      %59 = vector.broadcast %57 : vector<8x1xf32> to vector<8x128xf32>
      %60 = vector.broadcast %58 : vector<1x128xf32> to vector<8x128xf32>
      %61 = arith.mulf %59, %60 : vector<8x128xf32>
      %62 = arith.addf %56, %61 : vector<8x128xf32>
      %63 = vector.extract_strided_slice %49 {offsets = [0, 2], sizes = [8, 1], strides = [1, 1]} : vector<8x4xf32> to vector<8x1xf32>
      %64 = vector.extract_strided_slice %50 {offsets = [2, 0], sizes = [1, 128], strides = [1, 1]} : vector<4x128xf32> to vector<1x128xf32>
      %65 = vector.broadcast %63 : vector<8x1xf32> to vector<8x128xf32>
      %66 = vector.broadcast %64 : vector<1x128xf32> to vector<8x128xf32>
      %67 = arith.mulf %65, %66 : vector<8x128xf32>
      %68 = arith.addf %62, %67 : vector<8x128xf32>
      %69 = vector.extract_strided_slice %49 {offsets = [0, 3], sizes = [8, 1], strides = [1, 1]} : vector<8x4xf32> to vector<8x1xf32>
      %70 = vector.extract_strided_slice %50 {offsets = [3, 0], sizes = [1, 128], strides = [1, 1]} : vector<4x128xf32> to vector<1x128xf32>
      %71 = vector.broadcast %69 : vector<8x1xf32> to vector<8x128xf32>
      %72 = vector.broadcast %70 : vector<1x128xf32> to vector<8x128xf32>
      %73 = arith.mulf %71, %72 : vector<8x128xf32>
      %74 = arith.addf %68, %73 : vector<8x128xf32>
      %cst_33 = arith.constant 0.000000e+00 : f32
      %75 = vector.broadcast %cst_33 : f32 to vector<8x128xf32>
      %76 = arith.maximumf %74, %75 : vector<8x128xf32>
      %77 = vector.extract_strided_slice %76 {offsets = [0, 0], sizes = [8, 64], strides = [1, 1]} : vector<8x128xf32> to vector<8x64xf32>
      %78 = vector.extract_strided_slice %76 {offsets = [0, 64], sizes = [8, 64], strides = [1, 1]} : vector<8x128xf32> to vector<8x64xf32>
      %c0_34 = arith.constant 0 : index
      %c0_35 = arith.constant 0 : index
      %c0_36 = arith.constant 0 : index
      %79 = vector.load %arg11[%c0_34, %c0_35, %c0_36] : memref<2x64x64xf32, #tpu.memory_space<vmem>>, vector<1x64x64xf32>
      %80 = vector.shape_cast %79 : vector<1x64x64xf32> to vector<64x64xf32>
      %cst_37 = arith.constant dense<0.000000e+00> : vector<8x64xf32>
      %81 = tpu.matmul %77, %80, %cst_37 {dimension_numbers = #tpu.dot_dimension_numbers<[1], [0], [0], [1], [0, 0, 1, 1], [], []>} : vector<8x64xf32>, vector<64x64xf32>, vector<8x64xf32> -> vector<8x64xf32>
      %c0_38 = arith.constant 0 : index
      %c0_39 = arith.constant 0 : index
      %c0_40 = arith.constant 0 : index
      %82 = vector.load %arg12[%c0_38, %c0_39, %c0_40] : memref<2x1x64xf32, #tpu.memory_space<vmem>>, vector<1x1x64xf32>
      %83 = vector.shape_cast %82 : vector<1x1x64xf32> to vector<1x64xf32>
      %84 = vector.broadcast %83 : vector<1x64xf32> to vector<8x64xf32>
      %85 = arith.addf %81, %84 : vector<8x64xf32>
      %cst_41 = arith.constant 0.000000e+00 : f32
      %86 = vector.broadcast %cst_41 : f32 to vector<8x64xf32>
      %87 = arith.maximumf %85, %86 : vector<8x64xf32>
      %c1 = arith.constant 1 : index
      %c0_42 = arith.constant 0 : index
      %c0_43 = arith.constant 0 : index
      %88 = vector.load %arg11[%c1, %c0_42, %c0_43] : memref<2x64x64xf32, #tpu.memory_space<vmem>>, vector<1x64x64xf32>
      %89 = vector.shape_cast %88 : vector<1x64x64xf32> to vector<64x64xf32>
      %cst_44 = arith.constant dense<0.000000e+00> : vector<8x64xf32>
      %90 = tpu.matmul %78, %89, %cst_44 {dimension_numbers = #tpu.dot_dimension_numbers<[1], [0], [0], [1], [0, 0, 1, 1], [], []>} : vector<8x64xf32>, vector<64x64xf32>, vector<8x64xf32> -> vector<8x64xf32>
      %c1_45 = arith.constant 1 : index
      %c0_46 = arith.constant 0 : index
      %c0_47 = arith.constant 0 : index
      %91 = vector.load %arg12[%c1_45, %c0_46, %c0_47] : memref<2x1x64xf32, #tpu.memory_space<vmem>>, vector<1x1x64xf32>
      %92 = vector.shape_cast %91 : vector<1x1x64xf32> to vector<1x64xf32>
      %93 = vector.broadcast %92 : vector<1x64xf32> to vector<8x64xf32>
      %94 = arith.addf %90, %93 : vector<8x64xf32>
      %cst_48 = arith.constant 0.000000e+00 : f32
      %95 = vector.broadcast %cst_48 : f32 to vector<8x64xf32>
      %96 = arith.maximumf %94, %95 : vector<8x64xf32>
      %c0_49 = arith.constant 0 : index
      %c0_50 = arith.constant 0 : index
      %c0_51 = arith.constant 0 : index
      %97 = vector.load %arg13[%c0_49, %c0_50, %c0_51] : memref<2x64x1xf32, #tpu.memory_space<vmem>>, vector<1x64x1xf32>
      %98 = vector.shape_cast %97 : vector<1x64x1xf32> to vector<64x1xf32>
      %cst_52 = arith.constant dense<0.000000e+00> : vector<8x1xf32>
      %99 = tpu.matmul %87, %98, %cst_52 {dimension_numbers = #tpu.dot_dimension_numbers<[1], [0], [0], [1], [0, 0, 1, 1], [], []>} : vector<8x64xf32>, vector<64x1xf32>, vector<8x1xf32> -> vector<8x1xf32>
      %c0_53 = arith.constant 0 : index
      %c0_54 = arith.constant 0 : index
      %c0_55 = arith.constant 0 : index
      %100 = vector.load %arg14[%c0_53, %c0_54, %c0_55] : memref<2x1x1xf32, #tpu.memory_space<vmem>>, vector<1x1x1xf32>
      %101 = vector.shape_cast %100 : vector<1x1x1xf32> to vector<1x1xf32>
      %102 = vector.broadcast %101 : vector<1x1xf32> to vector<8x1xf32>
      %103 = arith.addf %99, %102 : vector<8x1xf32>
      %c1_56 = arith.constant 1 : index
      %c0_57 = arith.constant 0 : index
      %c0_58 = arith.constant 0 : index
      %104 = vector.load %arg13[%c1_56, %c0_57, %c0_58] : memref<2x64x1xf32, #tpu.memory_space<vmem>>, vector<1x64x1xf32>
      %105 = vector.shape_cast %104 : vector<1x64x1xf32> to vector<64x1xf32>
      %cst_59 = arith.constant dense<0.000000e+00> : vector<8x1xf32>
      %106 = tpu.matmul %96, %105, %cst_59 {dimension_numbers = #tpu.dot_dimension_numbers<[1], [0], [0], [1], [0, 0, 1, 1], [], []>} : vector<8x64xf32>, vector<64x1xf32>, vector<8x1xf32> -> vector<8x1xf32>
      %c1_60 = arith.constant 1 : index
      %c0_61 = arith.constant 0 : index
      %c0_62 = arith.constant 0 : index
      %107 = vector.load %arg14[%c1_60, %c0_61, %c0_62] : memref<2x1x1xf32, #tpu.memory_space<vmem>>, vector<1x1x1xf32>
      %108 = vector.shape_cast %107 : vector<1x1x1xf32> to vector<1x1xf32>
      %109 = vector.broadcast %108 : vector<1x1xf32> to vector<8x1xf32>
      %110 = arith.addf %106, %109 : vector<8x1xf32>
      %111 = tpu.concatenate %103, %110 in 1 : vector<8x1xf32>, vector<8x1xf32> -> vector<8x2xf32>
      %c0_63 = arith.constant 0 : index
      %c0_64 = arith.constant 0 : index
      %112 = vector.load %arg15[%c0_63, %c0_64] : memref<8x2xf32, #tpu.memory_space<vmem>>, vector<8x2xf32>
      tpu.vector_store %arg15[%c0_63, %c0_64], %111 {strides = array<i32>} : memref<8x2xf32, #tpu.memory_space<vmem>>, vector<8x2xf32>,
    } else {
    }
    return
  }
  func.func @transform_0(%arg0: i32, %arg1: i32) -> (i32, i32) {
    %c0_i32 = arith.constant 0 : i32
    return %arg0, %arg1 : i32, i32
  }
  func.func @transform_1(%arg0: i32, %arg1: i32) -> (i32, i32) {
    %c0_i32 = arith.constant 0 : i32
    %c0_i32_0 = arith.constant 0 : i32
    return %arg0, %c0_i32 : i32, i32
  }
  func.func @transform_2(%arg0: i32, %arg1: i32) -> (i32, i32) {
    %c0_i32 = arith.constant 0 : i32
    %c0_i32_0 = arith.constant 0 : i32
    return %arg1, %c0_i32 : i32, i32
  }
  func.func @transform_3(%arg0: i32, %arg1: i32) -> (i32, i32) {
    %c0_i32 = arith.constant 0 : i32
    %c0_i32_0 = arith.constant 0 : i32
    %c0_i32_1 = arith.constant 0 : i32
    return %c0_i32, %c0_i32_0 : i32, i32
  }
  func.func @transform_4(%arg0: i32, %arg1: i32) -> (i32, i32) {
    %c0_i32 = arith.constant 0 : i32
    %c0_i32_0 = arith.constant 0 : i32
    %c0_i32_1 = arith.constant 0 : i32
    return %c0_i32, %c0_i32_0 : i32, i32
  }
  func.func @transform_5(%arg0: i32, %arg1: i32) -> (i32, i32) {
    %c0_i32 = arith.constant 0 : i32
    %c0_i32_0 = arith.constant 0 : i32
    %c0_i32_1 = arith.constant 0 : i32
    return %c0_i32, %c0_i32_0 : i32, i32
  }
  func.func @transform_6(%arg0: i32, %arg1: i32) -> (i32, i32) {
    %c0_i32 = arith.constant 0 : i32
    %c0_i32_0 = arith.constant 0 : i32
    %c0_i32_1 = arith.constant 0 : i32
    return %c0_i32, %c0_i32_0 : i32, i32
  }
  func.func @transform_7(%arg0: i32, %arg1: i32) -> (i32, i32) {
    %c0_i32 = arith.constant 0 : i32
    %c0_i32_0 = arith.constant 0 : i32
    %c0_i32_1 = arith.constant 0 : i32
    return %c0_i32, %c0_i32_0 : i32, i32
  }
  func.func @transform_8(%arg0: i32, %arg1: i32) -> (i32, i32) {
    %c0_i32 = arith.constant 0 : i32
    %c0_i32_0 = arith.constant 0 : i32
    %c0_i32_1 = arith.constant 0 : i32
    return %c0_i32, %c0_i32_0 : i32, i32
  }
  func.func @transform_9(%arg0: i32, %arg1: i32) -> (i32, i32, i32) {
    %c0_i32 = arith.constant 0 : i32
    %c0_i32_0 = arith.constant 0 : i32
    %c0_i32_1 = arith.constant 0 : i32
    %c0_i32_2 = arith.constant 0 : i32
    return %c0_i32, %c0_i32_0, %c0_i32_1 : i32, i32, i32
  }
  func.func @transform_10(%arg0: i32, %arg1: i32) -> (i32, i32, i32) {
    %c0_i32 = arith.constant 0 : i32
    %c0_i32_0 = arith.constant 0 : i32
    %c0_i32_1 = arith.constant 0 : i32
    %c0_i32_2 = arith.constant 0 : i32
    return %c0_i32, %c0_i32_0, %c0_i32_1 : i32, i32, i32
  }
  func.func @transform_11(%arg0: i32, %arg1: i32) -> (i32, i32, i32) {
    %c0_i32 = arith.constant 0 : i32
    %c0_i32_0 = arith.constant 0 : i32
    %c0_i32_1 = arith.constant 0 : i32
    %c0_i32_2 = arith.constant 0 : i32
    return %c0_i32, %c0_i32_0, %c0_i32_1 : i32, i32, i32
  }
  func.func @transform_12(%arg0: i32, %arg1: i32) -> (i32, i32, i32) {
    %c0_i32 = arith.constant 0 : i32
    %c0_i32_0 = arith.constant 0 : i32
    %c0_i32_1 = arith.constant 0 : i32
    %c0_i32_2 = arith.constant 0 : i32
    return %c0_i32, %c0_i32_0, %c0_i32_1 : i32, i32, i32
  }
  func.func @transform_13(%arg0: i32, %arg1: i32) -> (i32, i32) {
    %c0_i32 = arith.constant 0 : i32
    %c0_i32_0 = arith.constant 0 : i32
    return %arg0, %c0_i32 : i32, i32
  }
}

module attributes {stable_mosaic.version = 11 : i64} {
  func.func @critic_kernel(%arg0: i32, %arg1: i32, %arg2: memref<8x32xf32, #tpu.memory_space<vmem>>, %arg3: memref<8x4xf32, #tpu.memory_space<vmem>>, %arg4: memref<32x128xf32, #tpu.memory_space<vmem>>, %arg5: memref<1x128xf32, #tpu.memory_space<vmem>>, %arg6: memref<1x128xf32, #tpu.memory_space<vmem>>, %arg7: memref<1x128xf32, #tpu.memory_space<vmem>>, %arg8: memref<128x128xf32, #tpu.memory_space<vmem>>, %arg9: memref<4x128xf32, #tpu.memory_space<vmem>>, %arg10: memref<1x128xf32, #tpu.memory_space<vmem>>, %arg11: memref<2x64x64xf32, #tpu.memory_space<vmem>>, %arg12: memref<2x1x64xf32, #tpu.memory_space<vmem>>, %arg13: memref<2x64x1xf32, #tpu.memory_space<vmem>>, %arg14: memref<2x1x1xf32, #tpu.memory_space<vmem>>, %arg15: memref<8x2xf32, #tpu.memory_space<vmem>>, %arg16: memref<8x128xf32, #tpu.memory_space<vmem>>) attributes {dimension_semantics = [#tpu.dimension_semantics<parallel>, #tpu.dimension_semantics<arbitrary>], iteration_bounds = array<i64: 1, 1>, scalar_prefetch = 0 : i64, scratch_operands = 1 : i64, tpu.core_type = #tpu.core_type<tc>, window_params = [{transform_indices = @transform_0, window_bounds = array<i64: 8, 32>}, {transform_indices = @transform_1, window_bounds = array<i64: 8, 4>}, {transform_indices = @transform_2, window_bounds = array<i64: 32, 128>}, {pipeline_mode = #tpu.pipeline_mode<synchronous>, transform_indices = @transform_3, window_bounds = array<i64: 1, 128>}, {pipeline_mode = #tpu.pipeline_mode<synchronous>, transform_indices = @transform_4, window_bounds = array<i64: 1, 128>}, {pipeline_mode = #tpu.pipeline_mode<synchronous>, transform_indices = @transform_5, window_bounds = array<i64: 1, 128>}, {pipeline_mode = #tpu.pipeline_mode<synchronous>, transform_indices = @transform_6, window_bounds = array<i64: 128, 128>}, {pipeline_mode = #tpu.pipeline_mode<synchronous>, transform_indices = @transform_7, window_bounds = array<i64: 4, 128>}, {pipeline_mode = #tpu.pipeline_mode<synchronous>, transform_indices = @transform_8, window_bounds = array<i64: 1, 128>}, {pipeline_mode = #tpu.pipeline_mode<synchronous>, transform_indices = @transform_9, window_bounds = array<i64: 2, 64, 64>}, {pipeline_mode = #tpu.pipeline_mode<synchronous>, transform_indices = @transform_10, window_bounds = array<i64: 2, 1, 64>}, {pipeline_mode = #tpu.pipeline_mode<synchronous>, transform_indices = @transform_11, window_bounds = array<i64: 2, 64, 1>}, {pipeline_mode = #tpu.pipeline_mode<synchronous>, transform_indices = @transform_12, window_bounds = array<i64: 2, 1, 1>}, {transform_indices = @transform_13, window_bounds = array<i64: 8, 2>}]} {
    %c0_i32 = arith.constant 0 : i32
    %0 = arith.cmpi eq, %arg1, %c0_i32 : i32
    %1 = arith.extui %0 : i1 to i32
    %c0_i32_0 = arith.constant 0 : i32
    %2 = arith.cmpi ne, %1, %c0_i32_0 : i32
    scf.if %2 {
      %cst_10 = arith.constant 0.000000e+00 : f32
      %12 = vector.broadcast %cst_10 : f32 to vector<8x128xf32>
      %c0_11 = arith.constant 0 : index
      %c0_12 = arith.constant 0 : index
      %13 = vector.load %arg16[%c0_11, %c0_12] : memref<8x128xf32, #tpu.memory_space<vmem>>, vector<8x128xf32>
      tpu.vector_store %arg16[%c0_11, %c0_12], %12 {strides = array<i32>} : memref<8x128xf32, #tpu.memory_space<vmem>>, vector<8x128xf32>,
    } else {
    }
    %c0 = arith.constant 0 : index
    %c0_1 = arith.constant 0 : index
    %3 = vector.load %arg2[%c0, %c0_1] : memref<8x32xf32, #tpu.memory_space<vmem>>, vector<8x32xf32>
    %c0_2 = arith.constant 0 : index
    %c0_3 = arith.constant 0 : index
    %4 = vector.load %arg16[%c0_2, %c0_3] : memref<8x128xf32, #tpu.memory_space<vmem>>, vector<8x128xf32>
    %c0_4 = arith.constant 0 : index
    %c0_5 = arith.constant 0 : index
    %5 = vector.load %arg4[%c0_4, %c0_5] : memref<32x128xf32, #tpu.memory_space<vmem>>, vector<32x128xf32>
    %cst = arith.constant dense<0.000000e+00> : vector<8x128xf32>
    %6 = tpu.matmul %3, %5, %cst {dimension_numbers = #tpu.dot_dimension_numbers<[1], [0], [0], [1], [0, 0, 1, 1], [], []>} : vector<8x32xf32>, vector<32x128xf32>, vector<8x128xf32> -> vector<8x128xf32>
    %7 = arith.addf %4, %6 : vector<8x128xf32>
    %c0_6 = arith.constant 0 : index
    %c0_7 = arith.constant 0 : index
    %8 = vector.load %arg16[%c0_6, %c0_7] : memref<8x128xf32, #tpu.memory_space<vmem>>, vector<8x128xf32>
    tpu.vector_store %arg16[%c0_6, %c0_7], %7 {strides = array<i32>} : memref<8x128xf32, #tpu.memory_space<vmem>>, vector<8x128xf32>,
    %c0_i32_8 = arith.constant 0 : i32
    %9 = arith.cmpi eq, %arg1, %c0_i32_8 : i32
    %10 = arith.extui %9 : i1 to i32
    %c0_i32_9 = arith.constant 0 : i32
    %11 = arith.cmpi ne, %10, %c0_i32_9 : i32
    scf.if %11 {
      %c0_10 = arith.constant 0 : index
      %c0_11 = arith.constant 0 : index
      %12 = vector.load %arg16[%c0_10, %c0_11] : memref<8x128xf32, #tpu.memory_space<vmem>>, vector<8x128xf32>
      %c0_12 = arith.constant 0 : index
      %c0_13 = arith.constant 0 : index
      %13 = vector.load %arg5[%c0_12, %c0_13] : memref<1x128xf32, #tpu.memory_space<vmem>>, vector<1x128xf32>
      %14 = vector.broadcast %13 : vector<1x128xf32> to vector<8x128xf32>
      %15 = arith.addf %12, %14 : vector<8x128xf32>
      %cst_14 = arith.constant dense<0.000000e+00> : vector<8xf32>
      %16 = vector.multi_reduction <add>, %15, %cst_14 [1] : vector<8x128xf32> to vector<8xf32>
      %17 = vector.shape_cast %16 : vector<8xf32> to vector<8x1xf32>
      %cst_15 = arith.constant 1.562500e-02 : f32
      %18 = vector.broadcast %cst_15 : f32 to vector<8x1xf32>
      %19 = arith.mulf %17, %18 : vector<8x1xf32>
      %20 = tpu.iota {dimensions = array<i32: 1>} : vector<8x128xi32>
      %c64_i32 = arith.constant 64 : i32
      %21 = vector.broadcast %c64_i32 : i32 to vector<8x128xi32>
      %22 = arith.cmpi slt, %20, %21 : vector<8x128xi32>
      %23 = vector.broadcast %19 : vector<8x1xf32> to vector<8x128xf32>
      %24 = arith.subf %15, %23 : vector<8x128xf32>
      %cst_16 = arith.constant 0.000000e+00 : f32
      %25 = vector.broadcast %cst_16 : f32 to vector<8x128xf32>
      %26 = arith.select %22, %24, %25 : vector<8x128xi1>, vector<8x128xf32>
      %27 = arith.mulf %26, %26 : vector<8x128xf32>
      %cst_17 = arith.constant dense<0.000000e+00> : vector<8xf32>
      %28 = vector.multi_reduction <add>, %27, %cst_17 [1] : vector<8x128xf32> to vector<8xf32>
      %29 = vector.shape_cast %28 : vector<8xf32> to vector<8x1xf32>
      %cst_18 = arith.constant 1.562500e-02 : f32
      %30 = vector.broadcast %cst_18 : f32 to vector<8x1xf32>
      %31 = arith.mulf %29, %30 : vector<8x1xf32>
      %cst_19 = arith.constant 9.99999974E-6 : f32
      %32 = vector.broadcast %cst_19 : f32 to vector<8x1xf32>
      %33 = arith.addf %31, %32 : vector<8x1xf32>
      %34 = math.rsqrt %33 : vector<8x1xf32>
      %35 = vector.broadcast %34 : vector<8x1xf32> to vector<8x128xf32>
      %36 = arith.mulf %26, %35 : vector<8x128xf32>
      %c0_20 = arith.constant 0 : index
      %c0_21 = arith.constant 0 : index
      %37 = vector.load %arg6[%c0_20, %c0_21] : memref<1x128xf32, #tpu.memory_space<vmem>>, vector<1x128xf32>
      %38 = vector.broadcast %37 : vector<1x128xf32> to vector<8x128xf32>
      %39 = arith.mulf %36, %38 : vector<8x128xf32>
      %c0_22 = arith.constant 0 : index
      %c0_23 = arith.constant 0 : index
      %40 = vector.load %arg7[%c0_22, %c0_23] : memref<1x128xf32, #tpu.memory_space<vmem>>, vector<1x128xf32>
      %41 = vector.broadcast %40 : vector<1x128xf32> to vector<8x128xf32>
      %42 = arith.addf %39, %41 : vector<8x128xf32>
      %43 = math.tanh %42 : vector<8x128xf32>
      %c0_24 = arith.constant 0 : index
      %c0_25 = arith.constant 0 : index
      %44 = vector.load %arg8[%c0_24, %c0_25] : memref<128x128xf32, #tpu.memory_space<vmem>>, vector<128x128xf32>
      %cst_26 = arith.constant dense<0.000000e+00> : vector<8x128xf32>
      %45 = tpu.matmul %43, %44, %cst_26 {dimension_numbers = #tpu.dot_dimension_numbers<[1], [0], [0], [1], [0, 0, 1, 1], [], []>} : vector<8x128xf32>, vector<128x128xf32>, vector<8x128xf32> -> vector<8x128xf32>
      %c0_27 = arith.constant 0 : index
      %c0_28 = arith.constant 0 : index
      %46 = vector.load %arg10[%c0_27, %c0_28] : memref<1x128xf32, #tpu.memory_space<vmem>>, vector<1x128xf32>
      %47 = vector.broadcast %46 : vector<1x128xf32> to vector<8x128xf32>
      %48 = arith.addf %45, %47 : vector<8x128xf32>
      %c0_29 = arith.constant 0 : index
      %c0_30 = arith.constant 0 : index
      %49 = vector.load %arg3[%c0_29, %c0_30] : memref<8x4xf32, #tpu.memory_space<vmem>>, vector<8x4xf32>
      %c0_31 = arith.constant 0 : index
      %c0_32 = arith.constant 0 : index
      %50 = vector.load %arg9[%c0_31, %c0_32] : memref<4x128xf32, #tpu.memory_space<vmem>>, vector<4x128xf32>
      %51 = vector.extract_strided_slice %49 {offsets = [0, 0], sizes = [8, 1], strides = [1, 1]} : vector<8x4xf32> to vector<8x1xf32>
      %52 = vector.extract_strided_slice %50 {offsets = [0, 0], sizes = [1, 128], strides = [1, 1]} : vector<4x128xf32> to vector<1x128xf32>
      %53 = vector.broadcast %51 : vector<8x1xf32> to vector<8x128xf32>
      %54 = vector.broadcast %52 : vector<1x128xf32> to vector<8x128xf32>
      %55 = arith.mulf %53, %54 : vector<8x128xf32>
      %56 = arith.addf %48, %55 : vector<8x128xf32>
      %57 = vector.extract_strided_slice %49 {offsets = [0, 1], sizes = [8, 1], strides = [1, 1]} : vector<8x4xf32> to vector<8x1xf32>
      %58 = vector.extract_strided_slice %50 {offsets = [1, 0], sizes = [1, 128], strides = [1, 1]} : vector<4x128xf32> to vector<1x128xf32>
      %59 = vector.broadcast %57 : vector<8x1xf32> to vector<8x128xf32>
      %60 = vector.broadcast %58 : vector<1x128xf32> to vector<8x128xf32>
      %61 = arith.mulf %59, %60 : vector<8x128xf32>
      %62 = arith.addf %56, %61 : vector<8x128xf32>
      %63 = vector.extract_strided_slice %49 {offsets = [0, 2], sizes = [8, 1], strides = [1, 1]} : vector<8x4xf32> to vector<8x1xf32>
      %64 = vector.extract_strided_slice %50 {offsets = [2, 0], sizes = [1, 128], strides = [1, 1]} : vector<4x128xf32> to vector<1x128xf32>
      %65 = vector.broadcast %63 : vector<8x1xf32> to vector<8x128xf32>
      %66 = vector.broadcast %64 : vector<1x128xf32> to vector<8x128xf32>
      %67 = arith.mulf %65, %66 : vector<8x128xf32>
      %68 = arith.addf %62, %67 : vector<8x128xf32>
      %69 = vector.extract_strided_slice %49 {offsets = [0, 3], sizes = [8, 1], strides = [1, 1]} : vector<8x4xf32> to vector<8x1xf32>
      %70 = vector.extract_strided_slice %50 {offsets = [3, 0], sizes = [1, 128], strides = [1, 1]} : vector<4x128xf32> to vector<1x128xf32>
      %71 = vector.broadcast %69 : vector<8x1xf32> to vector<8x128xf32>
      %72 = vector.broadcast %70 : vector<1x128xf32> to vector<8x128xf32>
      %73 = arith.mulf %71, %72 : vector<8x128xf32>
      %74 = arith.addf %68, %73 : vector<8x128xf32>
      %cst_33 = arith.constant 0.000000e+00 : f32
      %75 = vector.broadcast %cst_33 : f32 to vector<8x128xf32>
      %76 = arith.maximumf %74, %75 : vector<8x128xf32>
      %77 = vector.extract_strided_slice %76 {offsets = [0, 0], sizes = [8, 64], strides = [1, 1]} : vector<8x128xf32> to vector<8x64xf32>
      %78 = vector.extract_strided_slice %76 {offsets = [0, 64], sizes = [8, 64], strides = [1, 1]} : vector<8x128xf32> to vector<8x64xf32>
      %c0_34 = arith.constant 0 : index
      %c0_35 = arith.constant 0 : index
      %c0_36 = arith.constant 0 : index
      %79 = vector.load %arg11[%c0_34, %c0_35, %c0_36] : memref<2x64x64xf32, #tpu.memory_space<vmem>>, vector<1x64x64xf32>
      %80 = vector.shape_cast %79 : vector<1x64x64xf32> to vector<64x64xf32>
      %cst_37 = arith.constant dense<0.000000e+00> : vector<8x64xf32>
      %81 = tpu.matmul %77, %80, %cst_37 {dimension_numbers = #tpu.dot_dimension_numbers<[1], [0], [0], [1], [0, 0, 1, 1], [], []>} : vector<8x64xf32>, vector<64x64xf32>, vector<8x64xf32> -> vector<8x64xf32>
      %c0_38 = arith.constant 0 : index
      %c0_39 = arith.constant 0 : index
      %c0_40 = arith.constant 0 : index
      %82 = vector.load %arg12[%c0_38, %c0_39, %c0_40] : memref<2x1x64xf32, #tpu.memory_space<vmem>>, vector<1x1x64xf32>
      %83 = vector.shape_cast %82 : vector<1x1x64xf32> to vector<1x64xf32>
      %84 = vector.broadcast %83 : vector<1x64xf32> to vector<8x64xf32>
      %85 = arith.addf %81, %84 : vector<8x64xf32>
      %cst_41 = arith.constant 0.000000e+00 : f32
      %86 = vector.broadcast %cst_41 : f32 to vector<8x64xf32>
      %87 = arith.maximumf %85, %86 : vector<8x64xf32>
      %c1 = arith.constant 1 : index
      %c0_42 = arith.constant 0 : index
      %c0_43 = arith.constant 0 : index
      %88 = vector.load %arg11[%c1, %c0_42, %c0_43] : memref<2x64x64xf32, #tpu.memory_space<vmem>>, vector<1x64x64xf32>
      %89 = vector.shape_cast %88 : vector<1x64x64xf32> to vector<64x64xf32>
      %cst_44 = arith.constant dense<0.000000e+00> : vector<8x64xf32>
      %90 = tpu.matmul %78, %89, %cst_44 {dimension_numbers = #tpu.dot_dimension_numbers<[1], [0], [0], [1], [0, 0, 1, 1], [], []>} : vector<8x64xf32>, vector<64x64xf32>, vector<8x64xf32> -> vector<8x64xf32>
      %c1_45 = arith.constant 1 : index
      %c0_46 = arith.constant 0 : index
      %c0_47 = arith.constant 0 : index
      %91 = vector.load %arg12[%c1_45, %c0_46, %c0_47] : memref<2x1x64xf32, #tpu.memory_space<vmem>>, vector<1x1x64xf32>
      %92 = vector.shape_cast %91 : vector<1x1x64xf32> to vector<1x64xf32>
      %93 = vector.broadcast %92 : vector<1x64xf32> to vector<8x64xf32>
      %94 = arith.addf %90, %93 : vector<8x64xf32>
      %cst_48 = arith.constant 0.000000e+00 : f32
      %95 = vector.broadcast %cst_48 : f32 to vector<8x64xf32>
      %96 = arith.maximumf %94, %95 : vector<8x64xf32>
      %c0_49 = arith.constant 0 : index
      %c0_50 = arith.constant 0 : index
      %c0_51 = arith.constant 0 : index
      %97 = vector.load %arg13[%c0_49, %c0_50, %c0_51] : memref<2x64x1xf32, #tpu.memory_space<vmem>>, vector<1x64x1xf32>
      %98 = vector.shape_cast %97 : vector<1x64x1xf32> to vector<64x1xf32>
      %cst_52 = arith.constant dense<0.000000e+00> : vector<8x1xf32>
      %99 = tpu.matmul %87, %98, %cst_52 {dimension_numbers = #tpu.dot_dimension_numbers<[1], [0], [0], [1], [0, 0, 1, 1], [], []>} : vector<8x64xf32>, vector<64x1xf32>, vector<8x1xf32> -> vector<8x1xf32>
      %c0_53 = arith.constant 0 : index
      %c0_54 = arith.constant 0 : index
      %c0_55 = arith.constant 0 : index
      %100 = vector.load %arg14[%c0_53, %c0_54, %c0_55] : memref<2x1x1xf32, #tpu.memory_space<vmem>>, vector<1x1x1xf32>
      %101 = vector.shape_cast %100 : vector<1x1x1xf32> to vector<1x1xf32>
      %102 = vector.broadcast %101 : vector<1x1xf32> to vector<8x1xf32>
      %103 = arith.addf %99, %102 : vector<8x1xf32>
      %c1_56 = arith.constant 1 : index
      %c0_57 = arith.constant 0 : index
      %c0_58 = arith.constant 0 : index
      %104 = vector.load %arg13[%c1_56, %c0_57, %c0_58] : memref<2x64x1xf32, #tpu.memory_space<vmem>>, vector<1x64x1xf32>
      %105 = vector.shape_cast %104 : vector<1x64x1xf32> to vector<64x1xf32>
      %cst_59 = arith.constant dense<0.000000e+00> : vector<8x1xf32>
      %106 = tpu.matmul %96, %105, %cst_59 {dimension_numbers = #tpu.dot_dimension_numbers<[1], [0], [0], [1], [0, 0, 1, 1], [], []>} : vector<8x64xf32>, vector<64x1xf32>, vector<8x1xf32> -> vector<8x1xf32>
      %c1_60 = arith.constant 1 : index
      %c0_61 = arith.constant 0 : index
      %c0_62 = arith.constant 0 : index
      %107 = vector.load %arg14[%c1_60, %c0_61, %c0_62] : memref<2x1x1xf32, #tpu.memory_space<vmem>>, vector<1x1x1xf32>
      %108 = vector.shape_cast %107 : vector<1x1x1xf32> to vector<1x1xf32>
      %109 = vector.broadcast %108 : vector<1x1xf32> to vector<8x1xf32>
      %110 = arith.addf %106, %109 : vector<8x1xf32>
      %111 = tpu.concatenate %103, %110 in 1 : vector<8x1xf32>, vector<8x1xf32> -> vector<8x2xf32>
      %c0_63 = arith.constant 0 : index
      %c0_64 = arith.constant 0 : index
      %112 = vector.load %arg15[%c0_63, %c0_64] : memref<8x2xf32, #tpu.memory_space<vmem>>, vector<8x2xf32>
      tpu.vector_store %arg15[%c0_63, %c0_64], %111 {strides = array<i32>} : memref<8x2xf32, #tpu.memory_space<vmem>>, vector<8x2xf32>,
    } else {
    }
    return
  }
  func.func @transform_0(%arg0: i32, %arg1: i32) -> (i32, i32) {
    %c0_i32 = arith.constant 0 : i32
    return %arg0, %arg1 : i32, i32
  }
  func.func @transform_1(%arg0: i32, %arg1: i32) -> (i32, i32) {
    %c0_i32 = arith.constant 0 : i32
    %c0_i32_0 = arith.constant 0 : i32
    return %arg0, %c0_i32 : i32, i32
  }
  func.func @transform_2(%arg0: i32, %arg1: i32) -> (i32, i32) {
    %c0_i32 = arith.constant 0 : i32
    %c0_i32_0 = arith.constant 0 : i32
    return %arg1, %c0_i32 : i32, i32
  }
  func.func @transform_3(%arg0: i32, %arg1: i32) -> (i32, i32) {
    %c0_i32 = arith.constant 0 : i32
    %c0_i32_0 = arith.constant 0 : i32
    %c0_i32_1 = arith.constant 0 : i32
    return %c0_i32, %c0_i32_0 : i32, i32
  }
  func.func @transform_4(%arg0: i32, %arg1: i32) -> (i32, i32) {
    %c0_i32 = arith.constant 0 : i32
    %c0_i32_0 = arith.constant 0 : i32
    %c0_i32_1 = arith.constant 0 : i32
    return %c0_i32, %c0_i32_0 : i32, i32
  }
  func.func @transform_5(%arg0: i32, %arg1: i32) -> (i32, i32) {
    %c0_i32 = arith.constant 0 : i32
    %c0_i32_0 = arith.constant 0 : i32
    %c0_i32_1 = arith.constant 0 : i32
    return %c0_i32, %c0_i32_0 : i32, i32
  }
  func.func @transform_6(%arg0: i32, %arg1: i32) -> (i32, i32) {
    %c0_i32 = arith.constant 0 : i32
    %c0_i32_0 = arith.constant 0 : i32
    %c0_i32_1 = arith.constant 0 : i32
    return %c0_i32, %c0_i32_0 : i32, i32
  }
  func.func @transform_7(%arg0: i32, %arg1: i32) -> (i32, i32) {
    %c0_i32 = arith.constant 0 : i32
    %c0_i32_0 = arith.constant 0 : i32
    %c0_i32_1 = arith.constant 0 : i32
    return %c0_i32, %c0_i32_0 : i32, i32
  }
  func.func @transform_8(%arg0: i32, %arg1: i32) -> (i32, i32) {
    %c0_i32 = arith.constant 0 : i32
    %c0_i32_0 = arith.constant 0 : i32
    %c0_i32_1 = arith.constant 0 : i32
    return %c0_i32, %c0_i32_0 : i32, i32
  }
  func.func @transform_9(%arg0: i32, %arg1: i32) -> (i32, i32, i32) {
    %c0_i32 = arith.constant 0 : i32
    %c0_i32_0 = arith.constant 0 : i32
    %c0_i32_1 = arith.constant 0 : i32
    %c0_i32_2 = arith.constant 0 : i32
    return %c0_i32, %c0_i32_0, %c0_i32_1 : i32, i32, i32
  }
  func.func @transform_10(%arg0: i32, %arg1: i32) -> (i32, i32, i32) {
    %c0_i32 = arith.constant 0 : i32
    %c0_i32_0 = arith.constant 0 : i32
    %c0_i32_1 = arith.constant 0 : i32
    %c0_i32_2 = arith.constant 0 : i32
    return %c0_i32, %c0_i32_0, %c0_i32_1 : i32, i32, i32
  }
  func.func @transform_11(%arg0: i32, %arg1: i32) -> (i32, i32, i32) {
    %c0_i32 = arith.constant 0 : i32
    %c0_i32_0 = arith.constant 0 : i32
    %c0_i32_1 = arith.constant 0 : i32
    %c0_i32_2 = arith.constant 0 : i32
    return %c0_i32, %c0_i32_0, %c0_i32_1 : i32, i32, i32
  }
  func.func @transform_12(%arg0: i32, %arg1: i32) -> (i32, i32, i32) {
    %c0_i32 = arith.constant 0 : i32
    %c0_i32_0 = arith.constant 0 : i32
    %c0_i32_1 = arith.constant 0 : i32
    %c0_i32_2 = arith.constant 0 : i32
    return %c0_i32, %c0_i32_0, %c0_i32_1 : i32, i32, i32
  }
  func.func @transform_13(%arg0: i32, %arg1: i32) -> (i32, i32) {
    %c0_i32 = arith.constant 0 : i32
    %c0_i32_0 = arith.constant 0 : i32
    return %arg0, %c0_i32 : i32, i32
  }
}

</mosaic_0001>

<llo_original>
// kernel: tpu_custom_call.1
$region0: #{tpu_custom_call.1}
  #allocation0 [shape = 'u32[]', space=smem, size = 0x4, offset = 0x4, fixed_abs, tag = 'smem constant byte address 0x4 - core index']
  #allocation1 [shape = 'u32[144,128]{1,0:T(1,128)}', space=vmem, size = 0x12000, scoped, tag = 'internal scratch']
  #allocation2 [shape = 'f32[8,128]{1,0:T(8,128)}', space=vmem, size = 0x1000, scoped, tag = 'scratch operand']
  %s0 = inlined_call_operand.vmem [shape: f32[8,32], index: 0, kind: input, shape index: {}]
  %s1 = inlined_call_operand.vmem [shape: f32[8,4], index: 1, kind: input, shape index: {}]
  %s2 = inlined_call_operand.vmem [shape: f32[32,128], index: 2, kind: input, shape index: {}]
  %s3 = inlined_call_operand.hbm [shape: f32[1,128], index: 3, kind: input, shape index: {}]
  %s4 = inlined_call_operand.hbm [shape: f32[1,128], index: 4, kind: input, shape index: {}]
  %s5 = inlined_call_operand.hbm [shape: f32[1,128], index: 5, kind: input, shape index: {}]
  %s6 = inlined_call_operand.vmem [shape: f32[128,128], index: 6, kind: input, shape index: {}]
  %s7 = inlined_call_operand.vmem [shape: f32[4,128], index: 7, kind: input, shape index: {}]
  %s8 = inlined_call_operand.hbm [shape: f32[1,128], index: 8, kind: input, shape index: {}]
  %s9 = inlined_call_operand.hbm [shape: f32[2,64,64], index: 9, kind: input, shape index: {}]
  %s10 = inlined_call_operand.vmem [shape: f32[2,1,64], index: 10, kind: input, shape index: {}]
  %s11 = inlined_call_operand.vmem [shape: f32[2,64,1], index: 11, kind: input, shape index: {}]
  %s12 = inlined_call_operand.vmem [shape: f32[2,1,1], index: 12, kind: input, shape index: {}]
  %s13 = inlined_call_operand.vmem [shape: f32[8,2], index: 13, kind: output, shape index: {}]
  %s14 = sld [smem:[#allocation0]]
  $region90: #{tpu_custom_call.1} parent=0
    _
  %s16 = ssub.s32 1, %s14
  %s17 = scalar_select 0, %s16, %s14
  $region1: #{tpu_custom_call.1} parent=0
    #allocation3 [shape = 'u8[512]{0}', space=vmem, size = 0x400, scoped, tag = 'input window, operand 3, single buffered']
    #allocation4 [shape = 's32[1]{0}', space=sflag, size = 0x4, scoped, tag = 'scoped memory for tpu_custom_call.1']
    #allocation5 [shape = 'u8[512]{0}', space=vmem, size = 0x400, scoped, tag = 'input window, operand 4, single buffered']
    #allocation6 [shape = 's32[1]{0}', space=sflag, size = 0x4, scoped, tag = 'scoped memory for tpu_custom_call.1']
    #allocation7 [shape = 'u8[512]{0}', space=vmem, size = 0x400, scoped, tag = 'input window, operand 5, single buffered']
    #allocation8 [shape = 'u8[512]{0}', space=vmem, size = 0x400, scoped, tag = 'input window, operand 8, single buffered']
    #allocation9 [shape = 's32[1]{0}', space=sflag, size = 0x4, scoped, tag = 'scoped memory for tpu_custom_call.1']
    #allocation10 [shape = 'u8[65536]{0}', space=vmem, size = 0x10000, scoped, tag = 'input window, operand 9, single buffered']
    %18 = vsyncpa [#allocation4], 0
    %19 = vsyncpa [#allocation6], 0
    %20 = vsyncpa [#allocation9], 0
    // Predicated region
    $region2: #{tpu_custom_call.1} parent=1 // pred_check
      _
    $region3: #{tpu_custom_call.1} parent=1 // pred_check_branch
      %22 = sbr.rel (0) target = $region5
    $region4: #{tpu_custom_call.1} parent=1 // pred_region
      _
    $region5: #{tpu_custom_call.1} parent=1 // pred_fallthru
      _
    // Predicated region
    $region6: #{tpu_custom_call.1} parent=1 // pred_check
      _
    $region7: #{tpu_custom_call.1} parent=1 // pred_check_branch
      %24 = sbr.rel (0) target = $region9
    $region8: #{tpu_custom_call.1} parent=1 // pred_region
      _
    $region9: #{tpu_custom_call.1} parent=1 // pred_fallthru
      _
    // Predicated region
    $region10: #{tpu_custom_call.1} parent=1 // pred_check
      _
    $region11: #{tpu_custom_call.1} parent=1 // pred_check_branch
      %26 = sbr.rel (0) target = $region13
    $region12: #{tpu_custom_call.1} parent=1 // pred_region
      _
    $region13: #{tpu_custom_call.1} parent=1 // pred_fallthru
      _
    // Predicated region
    $region14: #{tpu_custom_call.1} parent=1 // pred_check
      _
    $region15: #{tpu_custom_call.1} parent=1 // pred_check_branch
      %28 = sbr.rel (0) target = $region17
    $region16: #{tpu_custom_call.1} parent=1 // pred_region
      %s30 = ssub.s32 16, 16
      %31 = vsyncadd [#allocation4], %s30
      %s33 = sshll.u32 [#allocation3], 4
      %s34 = int_to_ptr.vmem [resolvable:$true] %s33
      %36 = dma.hbm_to_vmem [thread:$0]  %s3, 16, %s34, [#allocation4]
    $region17: #{tpu_custom_call.1} parent=1 // pred_fallthru
      _
    // Predicated region
    $region18: #{tpu_custom_call.1} parent=1 // pred_check
      _
    $region19: #{tpu_custom_call.1} parent=1 // pred_check_branch
      %38 = sbr.rel (0) target = $region21
    $region20: #{tpu_custom_call.1} parent=1 // pred_region
      %s40 = ssub.s32 16, 16
      %41 = vsyncadd [#allocation6], %s40
      %s43 = sshll.u32 [#allocation5], 4
      %s44 = int_to_ptr.vmem [resolvable:$true] %s43
      %46 = dma.hbm_to_vmem [thread:$0]  %s4, 16, %s44, [#allocation6]
    $region21: #{tpu_custom_call.1} parent=1 // pred_fallthru
      _
    // Predicated region
    $region22: #{tpu_custom_call.1} parent=1 // pred_check
      _
    $region23: #{tpu_custom_call.1} parent=1 // pred_check_branch
      %48 = sbr.rel (0) target = $region25
    $region24: #{tpu_custom_call.1} parent=1 // pred_region
      %s50 = ssub.s32 16, 16
      %51 = vsyncadd [#allocation6], %s50
      %s53 = sshll.u32 [#allocation7], 4
      %s54 = int_to_ptr.vmem [resolvable:$true] %s53
      %56 = dma.hbm_to_vmem [thread:$0]  %s5, 16, %s54, [#allocation6]
    $region25: #{tpu_custom_call.1} parent=1 // pred_fallthru
      _
    // Predicated region
    $region26: #{tpu_custom_call.1} parent=1 // pred_check
      _
    $region27: #{tpu_custom_call.1} parent=1 // pred_check_branch
      %58 = sbr.rel (0) target = $region29
    $region28: #{tpu_custom_call.1} parent=1 // pred_region
      _
    $region29: #{tpu_custom_call.1} parent=1 // pred_fallthru
      _
    // Predicated region
    $region30: #{tpu_custom_call.1} parent=1 // pred_check
      _
    $region31: #{tpu_custom_call.1} parent=1 // pred_check_branch
      %60 = sbr.rel (0) target = $region33
    $region32: #{tpu_custom_call.1} parent=1 // pred_region
      _
    $region33: #{tpu_custom_call.1} parent=1 // pred_fallthru
      _
    // Predicated region
    $region34: #{tpu_custom_call.1} parent=1 // pred_check
      _
    $region35: #{tpu_custom_call.1} parent=1 // pred_check_branch
      %62 = sbr.rel (0) target = $region37
    $region36: #{tpu_custom_call.1} parent=1 // pred_region
      %s64 = ssub.s32 16, 16
      %65 = vsyncadd [#allocation9], %s64
      %s67 = sshll.u32 [#allocation8], 4
      %s68 = int_to_ptr.vmem [resolvable:$true] %s67
      %70 = dma.hbm_to_vmem [thread:$0]  %s8, 16, %s68, [#allocation9]
    $region37: #{tpu_custom_call.1} parent=1 // pred_fallthru
      _
    // Predicated region
    $region38: #{tpu_custom_call.1} parent=1 // pred_check
      _
    $region39: #{tpu_custom_call.1} parent=1 // pred_check_branch
      %72 = sbr.rel (0) target = $region41
    $region40: #{tpu_custom_call.1} parent=1 // pred_region
      %s74 = ssub.s32 2048, 2048
      %75 = vsyncadd [#allocation9], %s74
      %s76 = sshll.u32 [#allocation10], 4
      %s77 = int_to_ptr.vmem [resolvable:$true] %s76
      %82 = dma.hbm_to_vmem [thread:$0]  %s9, 2048, %s77, [#allocation9], 128, 128, 8
    $region41: #{tpu_custom_call.1} parent=1 // pred_fallthru
      _
    // Predicated region
    $region42: #{tpu_custom_call.1} parent=1 // pred_check
      _
    $region43: #{tpu_custom_call.1} parent=1 // pred_check_branch
      %84 = sbr.rel (0) target = $region45
    $region44: #{tpu_custom_call.1} parent=1 // pred_region
      _
    $region45: #{tpu_custom_call.1} parent=1 // pred_fallthru
      _
    // Predicated region
    $region46: #{tpu_custom_call.1} parent=1 // pred_check
      _
    $region47: #{tpu_custom_call.1} parent=1 // pred_check_branch
      %86 = sbr.rel (0) target = $region49
    $region48: #{tpu_custom_call.1} parent=1 // pred_region
      _
    $region49: #{tpu_custom_call.1} parent=1 // pred_fallthru
      _
    // Predicated region
    $region50: #{tpu_custom_call.1} parent=1 // pred_check
      _
    $region51: #{tpu_custom_call.1} parent=1 // pred_check_branch
      %88 = sbr.rel (0) target = $region53
    $region52: #{tpu_custom_call.1} parent=1 // pred_region
      _
    $region53: #{tpu_custom_call.1} parent=1 // pred_fallthru
      _
    // Predicated region
    $region54: #{tpu_custom_call.1} parent=1 // pred_check
      _
    $region55: #{tpu_custom_call.1} parent=1 // pred_check_branch
      %90 = sbr.rel (0) target = $region57
    $region56: #{tpu_custom_call.1} parent=1 // pred_region
      %91 = dma.done [#allocation4], 16
    $region57: #{tpu_custom_call.1} parent=1 // pred_fallthru
      _
    // Predicated region
    $region58: #{tpu_custom_call.1} parent=1 // pred_check
      _
    $region59: #{tpu_custom_call.1} parent=1 // pred_check_branch
      %93 = sbr.rel (0) target = $region61
    $region60: #{tpu_custom_call.1} parent=1 // pred_region
      %94 = dma.done [#allocation6], 16
    $region61: #{tpu_custom_call.1} parent=1 // pred_fallthru
      _
    // Predicated region
    $region62: #{tpu_custom_call.1} parent=1 // pred_check
      _
    $region63: #{tpu_custom_call.1} parent=1 // pred_check_branch
      %96 = sbr.rel (0) target = $region65
    $region64: #{tpu_custom_call.1} parent=1 // pred_region
      %97 = dma.done [#allocation6], 16
    $region65: #{tpu_custom_call.1} parent=1 // pred_fallthru
      _
    // Predicated region
    $region66: #{tpu_custom_call.1} parent=1 // pred_check
      _
    $region67: #{tpu_custom_call.1} parent=1 // pred_check_branch
      %99 = sbr.rel (0) target = $region69
    $region68: #{tpu_custom_call.1} parent=1 // pred_region
      %100 = dma.done [#allocation9], 16
    $region69: #{tpu_custom_call.1} parent=1 // pred_fallthru
      _
    // Predicated region
    $region70: #{tpu_custom_call.1} parent=1 // pred_check
      _
    $region71: #{tpu_custom_call.1} parent=1 // pred_check_branch
      %102 = sbr.rel (0) target = $region73
    $region72: #{tpu_custom_call.1} parent=1 // pred_region
      %103 = dma.done [#allocation9], 2048
    $region73: #{tpu_custom_call.1} parent=1 // pred_fallthru
      _
    %p104 = scmp.eq.s32.totalorder 0, 0
    // Predicated region
    $region74: #{tpu_custom_call.1} parent=1 // pred_check
      %p105 = pneg %p104
    $region75: #{tpu_custom_call.1} parent=1 // pred_check_branch
      %107 = sbr.rel (%p105) target = $region77
    $region76: #{tpu_custom_call.1} parent=1 // pred_region
      %108 = vst [vmem:[#allocation2] sm:$0xff] 0.0
    $region77: #{tpu_custom_call.1} parent=1 // pred_fallthru
      _
    %v109 = vld [vmem:[%s0] sm:$0xff]
    %v110 = vld [vmem:[#allocation2] sm:$0xff]
    %v111 = vld [vmem:[%s2] sm:$0xff]
    %v112 = vld [vmem:[%s2 + $0x8] sm:$0xff]
    %v113 = vld [vmem:[%s2 + $0x10] sm:$0xff]
    %v114 = vld [vmem:[%s2 + $0x18] sm:$0xff]
    %vm115 = vcmask 261120
    %v117 = vsel %vm115, %v109, 0
    %119 = vmatprep.subr.mxu0 0.0
    %120 = vmatpush1.msra.mxu0 %v111
    %121 = vmatprep.subr.mxu0 0.0
    %122 = vmatpush1.msra.mxu0 %v112
    %123 = vmatprep.subr.mxu0 0.0
    %124 = vmatpush1.msra.mxu0 %v113
    %125 = vmatprep.subr.mxu0 0.0
    %126 = vmatpush1.msra.mxu0 %v114
    %127 = vmatprep.subr.mxu0 0.0
    %128 = vmatpush1.msra.mxu0 0.0
    %129 = vmatprep.subr.mxu0 0.0
    %130 = vmatpush1.msra.mxu0 0.0
    %131 = vmatprep.subr.mxu0 0.0
    %132 = vmatpush1.msra.mxu0 0.0
    %133 = vmatprep.subr.mxu0 0.0
    %134 = vmatpush1.msra.mxu0 0.0
    %135 = vmatprep.subr.mxu0 0.0
    %136 = vmatpush1.msra.mxu0 0.0
    %137 = vmatprep.subr.mxu0 0.0
    %138 = vmatpush1.msra.mxu0 0.0
    %139 = vmatprep.subr.mxu0 0.0
    %140 = vmatpush1.msra.mxu0 0.0
    %141 = vmatprep.subr.mxu0 0.0
    %142 = vmatpush1.msra.mxu0 0.0
    %143 = vmatprep.subr.mxu0 0.0
    %144 = vmatpush1.msra.mxu0 0.0
    %145 = vmatprep.subr.mxu0 0.0
    %146 = vmatpush1.msra.mxu0 0.0
    %147 = vmatprep.subr.mxu0 0.0
    %148 = vmatpush1.msra.mxu0 0.0
    %149 = vmatprep.subr.mxu0 0.0
    %150 = vmatpush1.msra.mxu0 0.0
    %151 = vmatprep.subr.mxu0 0.0
    %152 = vmatpush1.msra.mxu0 0.0
    %153 = vmatprep.subr.mxu0 0.0
    %154 = vmatpush1.msra.mxu0 0.0
    %155 = vmatprep.subr.mxu0 0.0
    %156 = vmatpush1.msra.mxu0 0.0
    %157 = vmatprep.subr.mxu0 0.0
    %158 = vmatpush1.msra.mxu0 0.0
    %159 = vmatprep.subr.mxu0 0.0
    %160 = vmatpush1.msra.mxu0 0.0
    %161 = vmatprep.subr.mxu0 0.0
    %162 = vmatpush1.msra.mxu0 0.0
    %163 = vmatprep.subr.mxu0 0.0
    %164 = vmatpush1.msra.mxu0 0.0
    %165 = vmatprep.subr.mxu0 0.0
    %166 = vmatpush1.msra.mxu0 0.0
    %167 = vmatprep.subr.mxu0 0.0
    %168 = vmatpush1.msra.mxu0 0.0
    %169 = vmatprep.subr.mxu0 0.0
    %170 = vmatpush1.msra.mxu0 0.0
    %171 = vmatprep.subr.mxu0 0.0
    %172 = vmatpush1.msra.mxu0 0.0
    %173 = vmatprep.subr.mxu0 0.0
    %174 = vmatpush1.msra.mxu0 0.0
    %175 = vmatprep.subr.mxu0 0.0
    %176 = vmatpush1.msra.mxu0 0.0
    %177 = vmatprep.subr.mxu0 0.0
    %178 = vmatpush1.msra.mxu0 0.0
    %179 = vmatprep.subr.mxu0 0.0
    %180 = vmatpush1.msra.mxu0 0.0
    %181 = vmatprep.subr.mxu0 0.0
    %182 = vmatpush1.msra.mxu0 0.0
    %183 = vmatprep.mubr.f32.mxu0 0.0
    %184 = vmatmul.mubr.f32.gmra.mrb[0].mxu0 %v117
    %v185 = vpop.f32.mrb[0].mxu0
    %v186 = vadd.f32 0.0, %v185
    %v187 = vpop.f32.mrb[0].mxu0
    %188 = vdwg.mxu0
    %v189 = vadd.f32 %v110, %v186
    %190 = vst [vmem:[#allocation2] sm:$0xff] %v189
    // Predicated region
    $region78: #{tpu_custom_call.1} parent=1 // pred_check
      %p191 = pneg %p104
    $region79: #{tpu_custom_call.1} parent=1 // pred_check_branch
      %193 = sbr.rel (%p191) target = $region81
    $region80: #{tpu_custom_call.1} parent=1 // pred_region
      %v194 = vld [vmem:[#allocation2] sm:$0xff]
      %v195 = vld [vmem:[#allocation3] sm:$0x1]
      %v197 = vlaneseq
      %v198 = vshrl.u32 %v197, 7
      %v199 = vsub.s32 0, %v198
      %v200 = vrot.slane %v195, %v199
      %v202 = vadd.f32 %v194, %v200
      %203 = vadd.xlane.f32.xlu0 %v202
      %v204 = vpop.xlane.xlu0 %203
      %v205 = vmul.f32 %v204, 0.015625
      %v206 = vlaneseq
      %v207 = vand.u32 %v206, 127
      %vm208 = vcmp.lt.s32.totalorder %v207, 64
      %v209 = vsub.f32 %v202, %v205
      %v210 = vsel %vm208, %v209, 0.0
      %v211 = vmul.f32 %v210, %v210
      %212 = vadd.xlane.f32.xlu0 %v211
      %v213 = vpop.xlane.xlu0 %212
      %v214 = vmul.f32 %v213, 0.015625
      %v215 = vadd.f32 %v214, 1e-05
      %v216 = vrsqrt.pop %v215
      %v217 = vmul.f32 %v210, %v216
      %v218 = vld [vmem:[#allocation5] sm:$0x1]
      %v220 = vlaneseq
      %v221 = vshrl.u32 %v220, 7
      %v222 = vsub.s32 0, %v221
      %v223 = vrot.slane %v218, %v222
      %v225 = vmul.f32 %v217, %v223
      %v226 = vld [vmem:[#allocation7] sm:$0x1]
      %v228 = vlaneseq
      %v229 = vshrl.u32 %v228, 7
      %v230 = vsub.s32 0, %v229
      %v231 = vrot.slane %v226, %v230
      %v233 = vadd.f32 %v225, %v231
      %v234 = vtanh.pop %v233
      %v235 = vld [vmem:[%s6] sm:$0xff]
      %v236 = vld [vmem:[%s6 + $0x8] sm:$0xff]
      %v237 = vld [vmem:[%s6 + $0x10] sm:$0xff]
      %v238 = vld [vmem:[%s6 + $0x18] sm:$0xff]
      %v239 = vld [vmem:[%s6 + $0x20] sm:$0xff]
      %v240 = vld [vmem:[%s6 + $0x28] sm:$0xff]
      %v241 = vld [vmem:[%s6 + $0x30] sm:$0xff]
      %v242 = vld [vmem:[%s6 + $0x38] sm:$0xff]
      %v243 = vld [vmem:[%s6 + $0x40] sm:$0xff]
      %v244 = vld [vmem:[%s6 + $0x48] sm:$0xff]
      %v245 = vld [vmem:[%s6 + $0x50] sm:$0xff]
      %v246 = vld [vmem:[%s6 + $0x58] sm:$0xff]
      %v247 = vld [vmem:[%s6 + $0x60] sm:$0xff]
      %v248 = vld [vmem:[%s6 + $0x68] sm:$0xff]
      %v249 = vld [vmem:[%s6 + $0x70] sm:$0xff]
      %v250 = vld [vmem:[%s6 + $0x78] sm:$0xff]
      %v251 = vld [vmem:[#allocation8] sm:$0x1]
      %v253 = vlaneseq
      %v254 = vshrl.u32 %v253, 7
      %v255 = vsub.s32 0, %v254
      %v256 = vrot.slane %v251, %v255
      %258 = vmatprep.subr.mxu0 0.0
      %259 = vmatpush1.msra.mxu0 %v235
      %260 = vmatprep.subr.mxu0 0.0
      %261 = vmatpush1.msra.mxu0 %v236
      %262 = vmatprep.subr.mxu0 0.0
      %263 = vmatpush1.msra.mxu0 %v237
      %264 = vmatprep.subr.mxu0 0.0
      %265 = vmatpush1.msra.mxu0 %v238
      %266 = vmatprep.subr.mxu0 0.0
      %267 = vmatpush1.msra.mxu0 %v239
      %268 = vmatprep.subr.mxu0 0.0
      %269 = vmatpush1.msra.mxu0 %v240
      %270 = vmatprep.subr.mxu0 0.0
      %271 = vmatpush1.msra.mxu0 %v241
      %272 = vmatprep.subr.mxu0 0.0
      %273 = vmatpush1.msra.mxu0 %v242
      %274 = vmatprep.subr.mxu0 0.0
      %275 = vmatpush1.msra.mxu0 %v243
      %276 = vmatprep.subr.mxu0 0.0
      %277 = vmatpush1.msra.mxu0 %v244
      %278 = vmatprep.subr.mxu0 0.0
      %279 = vmatpush1.msra.mxu0 %v245
      %280 = vmatprep.subr.mxu0 0.0
      %281 = vmatpush1.msra.mxu0 %v246
      %282 = vmatprep.subr.mxu0 0.0
      %283 = vmatpush1.msra.mxu0 %v247
      %284 = vmatprep.subr.mxu0 0.0
      %285 = vmatpush1.msra.mxu0 %v248
      %286 = vmatprep.subr.mxu0 0.0
      %287 = vmatpush1.msra.mxu0 %v249
      %288 = vmatprep.subr.mxu0 0.0
      %289 = vmatpush1.msra.mxu0 %v250
      %290 = vmatprep.subr.mxu0 0.0
      %291 = vmatpush1.msra.mxu0 0.0
      %292 = vmatprep.subr.mxu0 0.0
      %293 = vmatpush1.msra.mxu0 0.0
      %294 = vmatprep.subr.mxu0 0.0
      %295 = vmatpush1.msra.mxu0 0.0
      %296 = vmatprep.subr.mxu0 0.0
      %297 = vmatpush1.msra.mxu0 0.0
      %298 = vmatprep.subr.mxu0 0.0
      %299 = vmatpush1.msra.mxu0 0.0
      %300 = vmatprep.subr.mxu0 0.0
      %301 = vmatpush1.msra.mxu0 0.0
      %302 = vmatprep.subr.mxu0 0.0
      %303 = vmatpush1.msra.mxu0 0.0
      %304 = vmatprep.subr.mxu0 0.0
      %305 = vmatpush1.msra.mxu0 0.0
      %306 = vmatprep.subr.mxu0 0.0
      %307 = vmatpush1.msra.mxu0 0.0
      %308 = vmatprep.subr.mxu0 0.0
      %309 = vmatpush1.msra.mxu0 0.0
      %310 = vmatprep.subr.mxu0 0.0
      %311 = vmatpush1.msra.mxu0 0.0
      %312 = vmatprep.subr.mxu0 0.0
      %313 = vmatpush1.msra.mxu0 0.0
      %314 = vmatprep.subr.mxu0 0.0
      %315 = vmatpush1.msra.mxu0 0.0
      %316 = vmatprep.subr.mxu0 0.0
      %317 = vmatpush1.msra.mxu0 0.0
      %318 = vmatprep.subr.mxu0 0.0
      %319 = vmatpush1.msra.mxu0 0.0
      %320 = vmatprep.subr.mxu0 0.0
      %321 = vmatpush1.msra.mxu0 0.0
      %322 = vmatprep.mubr.f32.mxu0 0.0
      %323 = vmatmul.mubr.f32.gmra.mrb[0].mxu0 %v234
      %v324 = vpop.f32.mrb[0].mxu0
      %v325 = vadd.f32 %v256, %v324
      %v326 = vpop.f32.mrb[0].mxu0
      %327 = vdwg.mxu0
      %v328 = vld [vmem:[%s1] sm:$0xff]
      %v329 = vld [vmem:[%s7] sm:$0xf]
      %331 = vset.pattern.permute.xlu0 0
      %332 = vperm.xlu0 %331, %v328
      %v333 = vpop.permute.xlu0 %332
      %v335 = vlaneseq
      %v336 = vshrl.u32 %v335, 7
      %v337 = vsub.s32 0, %v336
      %v338 = vrot.slane %v329, %v337
      %v339 = vmul.f32 %v333, %v338
      %v340 = vadd.f32 %v325, %v339
      %341 = vset.pattern.permute.xlu0 1
      %342 = vperm.xlu0 %341, %v328
      %v343 = vpop.permute.xlu0 %342
      %v345 = vlaneseq
      %v346 = vshrl.u32 %v345, 7
      %v347 = vsub.s32 1, %v346
      %v348 = vrot.slane %v329, %v347
      %v349 = vmul.f32 %v343, %v348
      %v350 = vadd.f32 %v340, %v349
      %351 = vset.pattern.permute.xlu0 2
      %352 = vperm.xlu0 %351, %v328
      %v353 = vpop.permute.xlu0 %352
      %v355 = vlaneseq
      %v356 = vshrl.u32 %v355, 7
      %v357 = vsub.s32 2, %v356
      %v358 = vrot.slane %v329, %v357
      %v359 = vmul.f32 %v353, %v358
      %v360 = vadd.f32 %v350, %v359
      %361 = vset.pattern.permute.xlu0 3
      %362 = vperm.xlu0 %361, %v328
      %v363 = vpop.permute.xlu0 %362
      %v365 = vlaneseq
      %v366 = vshrl.u32 %v365, 7
      %v367 = vsub.s32 3, %v366
      %v368 = vrot.slane %v329, %v367
      %v369 = vmul.f32 %v363, %v368
      %v370 = vadd.f32 %v360, %v369
      %v371 = vmax.f32 %v370, 0.0
      %v372 = vld [vmem:[#allocation10] sm:$0xff]
      %v373 = vld [vmem:[#allocation10 + $0x8] sm:$0xff]
      %v374 = vld [vmem:[#allocation10 + $0x10] sm:$0xff]
      %v375 = vld [vmem:[#allocation10 + $0x18] sm:$0xff]
      %v376 = vld [vmem:[#allocation10 + $0x20] sm:$0xff]
      %v377 = vld [vmem:[#allocation10 + $0x28] sm:$0xff]
      %v378 = vld [vmem:[#allocation10 + $0x30] sm:$0xff]
      %v379 = vld [vmem:[#allocation10 + $0x38] sm:$0xff]
      %v380 = vld [vmem:[%s10] sm:$0x1]
      %v382 = vlaneseq
      %v383 = vshrl.u32 %v382, 7
      %v384 = vsub.s32 0, %v383
      %v385 = vrot.slane %v380, %v384
      %vm387 = vcmask 523264
      %v389 = vsel %vm387, %v371, 0
      %391 = vmatprep.subr.mxu0 0.0
      %392 = vmatpush1.msra.mxu0 %v372
      %393 = vmatprep.subr.mxu0 0.0
      %394 = vmatpush1.msra.mxu0 %v373
      %395 = vmatprep.subr.mxu0 0.0
      %396 = vmatpush1.msra.mxu0 %v374
      %397 = vmatprep.subr.mxu0 0.0
      %398 = vmatpush1.msra.mxu0 %v375
      %399 = vmatprep.subr.mxu0 0.0
      %400 = vmatpush1.msra.mxu0 %v376
      %401 = vmatprep.subr.mxu0 0.0
      %402 = vmatpush1.msra.mxu0 %v377
      %403 = vmatprep.subr.mxu0 0.0
      %404 = vmatpush1.msra.mxu0 %v378
      %405 = vmatprep.subr.mxu0 0.0
      %406 = vmatpush1.msra.mxu0 %v379
      %407 = vmatprep.subr.mxu0 0.0
      %408 = vmatpush1.msra.mxu0 0.0
      %409 = vmatprep.subr.mxu0 0.0
      %410 = vmatpush1.msra.mxu0 0.0
      %411 = vmatprep.subr.mxu0 0.0
      %412 = vmatpush1.msra.mxu0 0.0
      %413 = vmatprep.subr.mxu0 0.0
      %414 = vmatpush1.msra.mxu0 0.0
      %415 = vmatprep.subr.mxu0 0.0
      %416 = vmatpush1.msra.mxu0 0.0
      %417 = vmatprep.subr.mxu0 0.0
      %418 = vmatpush1.msra.mxu0 0.0
      %419 = vmatprep.subr.mxu0 0.0
      %420 = vmatpush1.msra.mxu0 0.0
      %421 = vmatprep.subr.mxu0 0.0
      %422 = vmatpush1.msra.mxu0 0.0
      %423 = vmatprep.subr.mxu0 0.0
      %424 = vmatpush1.msra.mxu0 0.0
      %425 = vmatprep.subr.mxu0 0.0
      %426 = vmatpush1.msra.mxu0 0.0
      %427 = vmatprep.subr.mxu0 0.0
      %428 = vmatpush1.msra.mxu0 0.0
      %429 = vmatprep.subr.mxu0 0.0
      %430 = vmatpush1.msra.mxu0 0.0
      %431 = vmatprep.subr.mxu0 0.0
      %432 = vmatpush1.msra.mxu0 0.0
      %433 = vmatprep.subr.mxu0 0.0
      %434 = vmatpush1.msra.mxu0 0.0
      %435 = vmatprep.subr.mxu0 0.0
      %436 = vmatpush1.msra.mxu0 0.0
      %437 = vmatprep.subr.mxu0 0.0
      %438 = vmatpush1.msra.mxu0 0.0
      %439 = vmatprep.subr.mxu0 0.0
      %440 = vmatpush1.msra.mxu0 0.0
      %441 = vmatprep.subr.mxu0 0.0
      %442 = vmatpush1.msra.mxu0 0.0
      %443 = vmatprep.subr.mxu0 0.0
      %444 = vmatpush1.msra.mxu0 0.0
      %445 = vmatprep.subr.mxu0 0.0
      %446 = vmatpush1.msra.mxu0 0.0
      %447 = vmatprep.subr.mxu0 0.0
      %448 = vmatpush1.msra.mxu0 0.0
      %449 = vmatprep.subr.mxu0 0.0
      %450 = vmatpush1.msra.mxu0 0.0
      %451 = vmatprep.subr.mxu0 0.0
      %452 = vmatpush1.msra.mxu0 0.0
      %453 = vmatprep.subr.mxu0 0.0
      %454 = vmatpush1.msra.mxu0 0.0
      %455 = vmatprep.mubr.f32.mxu0 0.0
      %456 = vmatmul.mubr.f32.gmra.mrb[0].mxu0 %v389
      %v457 = vpop.f32.mrb[0].mxu0
      %v458 = vadd.f32 %v385, %v457
      %v459 = vpop.f32.mrb[0].mxu0
      %460 = vdwg.mxu0
      %v461 = vmax.f32 %v458, 0.0
      %s462 = scalar_lea.vmem [#allocation10], 64
      %v463 = vld [vmem:[%s462] sm:$0xff]
      %v464 = vld [vmem:[%s462 + $0x8] sm:$0xff]
      %v465 = vld [vmem:[%s462 + $0x10] sm:$0xff]
      %v466 = vld [vmem:[%s462 + $0x18] sm:$0xff]
      %v467 = vld [vmem:[%s462 + $0x20] sm:$0xff]
      %v468 = vld [vmem:[%s462 + $0x28] sm:$0xff]
      %v469 = vld [vmem:[%s462 + $0x30] sm:$0xff]
      %v470 = vld [vmem:[%s462 + $0x38] sm:$0xff]
      %s471 = scalar_lea.vmem %s10, 1
      %v472 = vld [vmem:[%s471] sm:$0x1]
      %v474 = vlaneseq
      %v475 = vshrl.u32 %v474, 7
      %v476 = vsub.s32 0, %v475
      %v477 = vrot.slane %v472, %v476
      %479 = vrot.lane.b32.xlu0 %v371, 64
      %v480 = vpop.permute.xlu0 %479
      %v481 = vsel %vm387, %v480, 0
      %483 = vmatprep.subr.mxu0 0.0
      %484 = vmatpush1.msra.mxu0 %v463
      %485 = vmatprep.subr.mxu0 0.0
      %486 = vmatpush1.msra.mxu0 %v464
      %487 = vmatprep.subr.mxu0 0.0
      %488 = vmatpush1.msra.mxu0 %v465
      %489 = vmatprep.subr.mxu0 0.0
      %490 = vmatpush1.msra.mxu0 %v466
      %491 = vmatprep.subr.mxu0 0.0
      %492 = vmatpush1.msra.mxu0 %v467
      %493 = vmatprep.subr.mxu0 0.0
      %494 = vmatpush1.msra.mxu0 %v468
      %495 = vmatprep.subr.mxu0 0.0
      %496 = vmatpush1.msra.mxu0 %v469
      %497 = vmatprep.subr.mxu0 0.0
      %498 = vmatpush1.msra.mxu0 %v470
      %499 = vmatprep.subr.mxu0 0.0
      %500 = vmatpush1.msra.mxu0 0.0
      %501 = vmatprep.subr.mxu0 0.0
      %502 = vmatpush1.msra.mxu0 0.0
      %503 = vmatprep.subr.mxu0 0.0
      %504 = vmatpush1.msra.mxu0 0.0
      %505 = vmatprep.subr.mxu0 0.0
      %506 = vmatpush1.msra.mxu0 0.0
      %507 = vmatprep.subr.mxu0 0.0
      %508 = vmatpush1.msra.mxu0 0.0
      %509 = vmatprep.subr.mxu0 0.0
      %510 = vmatpush1.msra.mxu0 0.0
      %511 = vmatprep.subr.mxu0 0.0
      %512 = vmatpush1.msra.mxu0 0.0
      %513 = vmatprep.subr.mxu0 0.0
      %514 = vmatpush1.msra.mxu0 0.0
      %515 = vmatprep.subr.mxu0 0.0
      %516 = vmatpush1.msra.mxu0 0.0
      %517 = vmatprep.subr.mxu0 0.0
      %518 = vmatpush1.msra.mxu0 0.0
      %519 = vmatprep.subr.mxu0 0.0
      %520 = vmatpush1.msra.mxu0 0.0
      %521 = vmatprep.subr.mxu0 0.0
      %522 = vmatpush1.msra.mxu0 0.0
      %523 = vmatprep.subr.mxu0 0.0
      %524 = vmatpush1.msra.mxu0 0.0
      %525 = vmatprep.subr.mxu0 0.0
      %526 = vmatpush1.msra.mxu0 0.0
      %527 = vmatprep.subr.mxu0 0.0
      %528 = vmatpush1.msra.mxu0 0.0
      %529 = vmatprep.subr.mxu0 0.0
      %530 = vmatpush1.msra.mxu0 0.0
      %531 = vmatprep.subr.mxu0 0.0
      %532 = vmatpush1.msra.mxu0 0.0
      %533 = vmatprep.subr.mxu0 0.0
      %534 = vmatpush1.msra.mxu0 0.0
      %535 = vmatprep.subr.mxu0 0.0
      %536 = vmatpush1.msra.mxu0 0.0
      %537 = vmatprep.subr.mxu0 0.0
      %538 = vmatpush1.msra.mxu0 0.0
      %539 = vmatprep.subr.mxu0 0.0
      %540 = vmatpush1.msra.mxu0 0.0
      %541 = vmatprep.subr.mxu0 0.0
      %542 = vmatpush1.msra.mxu0 0.0
      %543 = vmatprep.subr.mxu0 0.0
      %544 = vmatpush1.msra.mxu0 0.0
      %545 = vmatprep.subr.mxu0 0.0
      %546 = vmatpush1.msra.mxu0 0.0
      %547 = vmatprep.mubr.f32.mxu0 0.0
      %548 = vmatmul.mubr.f32.gmra.mrb[0].mxu0 %v481
      %v549 = vpop.f32.mrb[0].mxu0
      %v550 = vadd.f32 %v477, %v549
      %v551 = vpop.f32.mrb[0].mxu0
      %552 = vdwg.mxu0
      %v553 = vmax.f32 %v550, 0.0
      %v554 = vld [vmem:[%s11] sm:$0xff]
      %v555 = vld [vmem:[%s11 + $0x8] sm:$0xff]
      %v556 = vld [vmem:[%s11 + $0x10] sm:$0xff]
      %v557 = vld [vmem:[%s11 + $0x18] sm:$0xff]
      %v558 = vld [vmem:[%s11 + $0x20] sm:$0xff]
      %v559 = vld [vmem:[%s11 + $0x28] sm:$0xff]
      %v560 = vld [vmem:[%s11 + $0x30] sm:$0xff]
      %v561 = vld [vmem:[%s11 + $0x38] sm:$0xff]
      %v562 = vld [vmem:[%s12] sm:$0x1]
      %v564 = vlaneseq
      %v565 = vshrl.u32 %v564, 7
      %v566 = vsub.s32 0, %v565
      %v567 = vrot.slane %v562, %v566
      %v570 = vsel %vm387, %v461, 0
      %572 = vmatprep.subr.mxu0 0.0
      %573 = vmatpush1.msra.mxu0 %v554
      %574 = vmatprep.subr.mxu0 0.0
      %575 = vmatpush1.msra.mxu0 %v555
      %576 = vmatprep.subr.mxu0 0.0
      %577 = vmatpush1.msra.mxu0 %v556
      %578 = vmatprep.subr.mxu0 0.0
      %579 = vmatpush1.msra.mxu0 %v557
      %580 = vmatprep.subr.mxu0 0.0
      %581 = vmatpush1.msra.mxu0 %v558
      %582 = vmatprep.subr.mxu0 0.0
      %583 = vmatpush1.msra.mxu0 %v559
      %584 = vmatprep.subr.mxu0 0.0
      %585 = vmatpush1.msra.mxu0 %v560
      %586 = vmatprep.subr.mxu0 0.0
      %587 = vmatpush1.msra.mxu0 %v561
      %588 = vmatprep.subr.mxu0 0.0
      %589 = vmatpush1.msra.mxu0 0.0
      %590 = vmatprep.subr.mxu0 0.0
      %591 = vmatpush1.msra.mxu0 0.0
      %592 = vmatprep.subr.mxu0 0.0
      %593 = vmatpush1.msra.mxu0 0.0
      %594 = vmatprep.subr.mxu0 0.0
      %595 = vmatpush1.msra.mxu0 0.0
      %596 = vmatprep.subr.mxu0 0.0
      %597 = vmatpush1.msra.mxu0 0.0
      %598 = vmatprep.subr.mxu0 0.0
      %599 = vmatpush1.msra.mxu0 0.0
      %600 = vmatprep.subr.mxu0 0.0
      %601 = vmatpush1.msra.mxu0 0.0
      %602 = vmatprep.subr.mxu0 0.0
      %603 = vmatpush1.msra.mxu0 0.0
      %604 = vmatprep.subr.mxu0 0.0
      %605 = vmatpush1.msra.mxu0 0.0
      %606 = vmatprep.subr.mxu0 0.0
      %607 = vmatpush1.msra.mxu0 0.0
      %608 = vmatprep.subr.mxu0 0.0
      %609 = vmatpush1.msra.mxu0 0.0
      %610 = vmatprep.subr.mxu0 0.0
      %611 = vmatpush1.msra.mxu0 0.0
      %612 = vmatprep.subr.mxu0 0.0
      %613 = vmatpush1.msra.mxu0 0.0
      %614 = vmatprep.subr.mxu0 0.0
      %615 = vmatpush1.msra.mxu0 0.0
      %616 = vmatprep.subr.mxu0 0.0
      %617 = vmatpush1.msra.mxu0 0.0
      %618 = vmatprep.subr.mxu0 0.0
      %619 = vmatpush1.msra.mxu0 0.0
      %620 = vmatprep.subr.mxu0 0.0
      %621 = vmatpush1.msra.mxu0 0.0
      %622 = vmatprep.subr.mxu0 0.0
      %623 = vmatpush1.msra.mxu0 0.0
      %624 = vmatprep.subr.mxu0 0.0
      %625 = vmatpush1.msra.mxu0 0.0
      %626 = vmatprep.subr.mxu0 0.0
      %627 = vmatpush1.msra.mxu0 0.0
      %628 = vmatprep.subr.mxu0 0.0
      %629 = vmatpush1.msra.mxu0 0.0
      %630 = vmatprep.subr.mxu0 0.0
      %631 = vmatpush1.msra.mxu0 0.0
      %632 = vmatprep.subr.mxu0 0.0
      %633 = vmatpush1.msra.mxu0 0.0
      %634 = vmatprep.subr.mxu0 0.0
      %635 = vmatpush1.msra.mxu0 0.0
      %636 = vmatprep.mubr.f32.mxu0 0.0
      %637 = vmatmul.mubr.f32.gmra.mrb[0].mxu0 %v570
      %v638 = vpop.f32.mrb[0].mxu0
      %v639 = vadd.f32 %v567, %v638
      %v640 = vpop.f32.mrb[0].mxu0
      %641 = vdwg.mxu0
      %s642 = scalar_lea.vmem %s11, 64
      %v643 = vld [vmem:[%s642] sm:$0xff]
      %v644 = vld [vmem:[%s642 + $0x8] sm:$0xff]
      %v645 = vld [vmem:[%s642 + $0x10] sm:$0xff]
      %v646 = vld [vmem:[%s642 + $0x18] sm:$0xff]
      %v647 = vld [vmem:[%s642 + $0x20] sm:$0xff]
      %v648 = vld [vmem:[%s642 + $0x28] sm:$0xff]
      %v649 = vld [vmem:[%s642 + $0x30] sm:$0xff]
      %v650 = vld [vmem:[%s642 + $0x38] sm:$0xff]
      %s651 = scalar_lea.vmem %s12, 1
      %v652 = vld [vmem:[%s651] sm:$0x1]
      %v654 = vlaneseq
      %v655 = vshrl.u32 %v654, 7
      %v656 = vsub.s32 0, %v655
      %v657 = vrot.slane %v652, %v656
      %v660 = vsel %vm387, %v553, 0
      %662 = vmatprep.subr.mxu0 0.0
      %663 = vmatpush1.msra.mxu0 %v643
      %664 = vmatprep.subr.mxu0 0.0
      %665 = vmatpush1.msra.mxu0 %v644
      %666 = vmatprep.subr.mxu0 0.0
      %667 = vmatpush1.msra.mxu0 %v645
      %668 = vmatprep.subr.mxu0 0.0
      %669 = vmatpush1.msra.mxu0 %v646
      %670 = vmatprep.subr.mxu0 0.0
      %671 = vmatpush1.msra.mxu0 %v647
      %672 = vmatprep.subr.mxu0 0.0
      %673 = vmatpush1.msra.mxu0 %v648
      %674 = vmatprep.subr.mxu0 0.0
      %675 = vmatpush1.msra.mxu0 %v649
      %676 = vmatprep.subr.mxu0 0.0
      %677 = vmatpush1.msra.mxu0 %v650
      %678 = vmatprep.subr.mxu0 0.0
      %679 = vmatpush1.msra.mxu0 0.0
      %680 = vmatprep.subr.mxu0 0.0
      %681 = vmatpush1.msra.mxu0 0.0
      %682 = vmatprep.subr.mxu0 0.0
      %683 = vmatpush1.msra.mxu0 0.0
      %684 = vmatprep.subr.mxu0 0.0
      %685 = vmatpush1.msra.mxu0 0.0
      %686 = vmatprep.subr.mxu0 0.0
      %687 = vmatpush1.msra.mxu0 0.0
      %688 = vmatprep.subr.mxu0 0.0
      %689 = vmatpush1.msra.mxu0 0.0
      %690 = vmatprep.subr.mxu0 0.0
      %691 = vmatpush1.msra.mxu0 0.0
      %692 = vmatprep.subr.mxu0 0.0
      %693 = vmatpush1.msra.mxu0 0.0
      %694 = vmatprep.subr.mxu0 0.0
      %695 = vmatpush1.msra.mxu0 0.0
      %696 = vmatprep.subr.mxu0 0.0
      %697 = vmatpush1.msra.mxu0 0.0
      %698 = vmatprep.subr.mxu0 0.0
      %699 = vmatpush1.msra.mxu0 0.0
      %700 = vmatprep.subr.mxu0 0.0
      %701 = vmatpush1.msra.mxu0 0.0
      %702 = vmatprep.subr.mxu0 0.0
      %703 = vmatpush1.msra.mxu0 0.0
      %704 = vmatprep.subr.mxu0 0.0
      %705 = vmatpush1.msra.mxu0 0.0
      %706 = vmatprep.subr.mxu0 0.0
      %707 = vmatpush1.msra.mxu0 0.0
      %708 = vmatprep.subr.mxu0 0.0
      %709 = vmatpush1.msra.mxu0 0.0
      %710 = vmatprep.subr.mxu0 0.0
      %711 = vmatpush1.msra.mxu0 0.0
      %712 = vmatprep.subr.mxu0 0.0
      %713 = vmatpush1.msra.mxu0 0.0
      %714 = vmatprep.subr.mxu0 0.0
      %715 = vmatpush1.msra.mxu0 0.0
      %716 = vmatprep.subr.mxu0 0.0
      %717 = vmatpush1.msra.mxu0 0.0
      %718 = vmatprep.subr.mxu0 0.0
      %719 = vmatpush1.msra.mxu0 0.0
      %720 = vmatprep.subr.mxu0 0.0
      %721 = vmatpush1.msra.mxu0 0.0
      %722 = vmatprep.subr.mxu0 0.0
      %723 = vmatpush1.msra.mxu0 0.0
      %724 = vmatprep.subr.mxu0 0.0
      %725 = vmatpush1.msra.mxu0 0.0
      %726 = vmatprep.mubr.f32.mxu0 0.0
      %727 = vmatmul.mubr.f32.gmra.mrb[0].mxu0 %v660
      %v728 = vpop.f32.mrb[0].mxu0
      %v729 = vadd.f32 %v657, %v728
      %v730 = vpop.f32.mrb[0].mxu0
      %731 = vdwg.mxu0
      %733 = vrot.lane.b32.xlu0 %v729, 1
      %v734 = vpop.permute.xlu0 %733
      %vm736 = vcmask 7168
      %v737 = vsel %vm736, %v639, %v734
      %vm738 = vcmask 15360
      %739 = vst.msk [vmem:[%s13] sm:$0xff] %vm738, %v737
    $region81: #{tpu_custom_call.1} parent=1 // pred_fallthru
      _
    // Predicated region
    $region82: #{tpu_custom_call.1} parent=1 // pred_check
      _
    $region83: #{tpu_custom_call.1} parent=1 // pred_check_branch
      %741 = sbr.rel (0) target = $region85
    $region84: #{tpu_custom_call.1} parent=1 // pred_region
      _
    $region85: #{tpu_custom_call.1} parent=1 // pred_fallthru
      _
    // Predicated region
    $region86: #{tpu_custom_call.1} parent=1 // pred_check
      _
    $region87: #{tpu_custom_call.1} parent=1 // pred_check_branch
      %743 = sbr.rel (0) target = $region89
    $region88: #{tpu_custom_call.1} parent=1 // pred_region
      _
    $region89: #{tpu_custom_call.1} parent=1 // pred_fallthru
      _
    %744 = vsyncpa [#allocation4], 1
    %745 = vsyncpa [#allocation6], 1
    %746 = vsyncpa [#allocation9], 1

// kernel: tpu_custom_call.1
$region0: #{tpu_custom_call.1}
  #allocation0 [shape = 'u32[]', space=smem, size = 0x4, offset = 0x4, fixed_abs, tag = 'smem constant byte address 0x4 - core index']
  #allocation1 [shape = 'u32[144,128]{1,0:T(1,128)}', space=vmem, size = 0x12000, scoped, tag = 'internal scratch']
  #allocation2 [shape = 'f32[8,128]{1,0:T(8,128)}', space=vmem, size = 0x1000, scoped, tag = 'scratch operand']
  %s0 = inlined_call_operand.vmem [shape: f32[8,32], index: 0, kind: input, shape index: {}]
  %s1 = inlined_call_operand.vmem [shape: f32[8,4], index: 1, kind: input, shape index: {}]
  %s2 = inlined_call_operand.vmem [shape: f32[32,128], index: 2, kind: input, shape index: {}]
  %s3 = inlined_call_operand.hbm [shape: f32[1,128], index: 3, kind: input, shape index: {}]
  %s4 = inlined_call_operand.hbm [shape: f32[1,128], index: 4, kind: input, shape index: {}]
  %s5 = inlined_call_operand.hbm [shape: f32[1,128], index: 5, kind: input, shape index: {}]
  %s6 = inlined_call_operand.vmem [shape: f32[128,128], index: 6, kind: input, shape index: {}]
  %s7 = inlined_call_operand.vmem [shape: f32[4,128], index: 7, kind: input, shape index: {}]
  %s8 = inlined_call_operand.hbm [shape: f32[1,128], index: 8, kind: input, shape index: {}]
  %s9 = inlined_call_operand.hbm [shape: f32[2,64,64], index: 9, kind: input, shape index: {}]
  %s10 = inlined_call_operand.vmem [shape: f32[2,1,64], index: 10, kind: input, shape index: {}]
  %s11 = inlined_call_operand.vmem [shape: f32[2,64,1], index: 11, kind: input, shape index: {}]
  %s12 = inlined_call_operand.vmem [shape: f32[2,1,1], index: 12, kind: input, shape index: {}]
  %s13 = inlined_call_operand.vmem [shape: f32[8,2], index: 13, kind: output, shape index: {}]
  %s14 = sld [smem:[#allocation0]]
  $region90: #{tpu_custom_call.1} parent=0
    _
  %s16 = ssub.s32 1, %s14
  %s17 = scalar_select 0, %s16, %s14
  $region1: #{tpu_custom_call.1} parent=0
    #allocation3 [shape = 'u8[512]{0}', space=vmem, size = 0x400, scoped, tag = 'input window, operand 3, single buffered']
    #allocation4 [shape = 's32[1]{0}', space=sflag, size = 0x4, scoped, tag = 'scoped memory for tpu_custom_call.1']
    #allocation5 [shape = 'u8[512]{0}', space=vmem, size = 0x400, scoped, tag = 'input window, operand 4, single buffered']
    #allocation6 [shape = 's32[1]{0}', space=sflag, size = 0x4, scoped, tag = 'scoped memory for tpu_custom_call.1']
    #allocation7 [shape = 'u8[512]{0}', space=vmem, size = 0x400, scoped, tag = 'input window, operand 5, single buffered']
    #allocation8 [shape = 'u8[512]{0}', space=vmem, size = 0x400, scoped, tag = 'input window, operand 8, single buffered']
    #allocation9 [shape = 's32[1]{0}', space=sflag, size = 0x4, scoped, tag = 'scoped memory for tpu_custom_call.1']
    #allocation10 [shape = 'u8[65536]{0}', space=vmem, size = 0x10000, scoped, tag = 'input window, operand 9, single buffered']
    %18 = vsyncpa [#allocation4], 0
    %19 = vsyncpa [#allocation6], 0
    %20 = vsyncpa [#allocation9], 0
    // Predicated region
    $region2: #{tpu_custom_call.1} parent=1 // pred_check
      _
    $region3: #{tpu_custom_call.1} parent=1 // pred_check_branch
      %22 = sbr.rel (0) target = $region5
    $region4: #{tpu_custom_call.1} parent=1 // pred_region
      _
    $region5: #{tpu_custom_call.1} parent=1 // pred_fallthru
      _
    // Predicated region
    $region6: #{tpu_custom_call.1} parent=1 // pred_check
      _
    $region7: #{tpu_custom_call.1} parent=1 // pred_check_branch
      %24 = sbr.rel (0) target = $region9
    $region8: #{tpu_custom_call.1} parent=1 // pred_region
      _
    $region9: #{tpu_custom_call.1} parent=1 // pred_fallthru
      _
    // Predicated region
    $region10: #{tpu_custom_call.1} parent=1 // pred_check
      _
    $region11: #{tpu_custom_call.1} parent=1 // pred_check_branch
      %26 = sbr.rel (0) target = $region13
    $region12: #{tpu_custom_call.1} parent=1 // pred_region
      _
    $region13: #{tpu_custom_call.1} parent=1 // pred_fallthru
      _
    // Predicated region
    $region14: #{tpu_custom_call.1} parent=1 // pred_check
      _
    $region15: #{tpu_custom_call.1} parent=1 // pred_check_branch
      %28 = sbr.rel (0) target = $region17
    $region16: #{tpu_custom_call.1} parent=1 // pred_region
      %s30 = ssub.s32 16, 16
      %31 = vsyncadd [#allocation4], %s30
      %s33 = sshll.u32 [#allocation3], 4
      %s34 = int_to_ptr.vmem [resolvable:$true] %s33
      %36 = dma.hbm_to_vmem [thread:$0]  %s3, 16, %s34, [#allocation4]
    $region17: #{tpu_custom_call.1} parent=1 // pred_fallthru
      _
    // Predicated region
    $region18: #{tpu_custom_call.1} parent=1 // pred_check
      _
    $region19: #{tpu_custom_call.1} parent=1 // pred_check_branch
      %38 = sbr.rel (0) target = $region21
    $region20: #{tpu_custom_call.1} parent=1 // pred_region
      %s40 = ssub.s32 16, 16
      %41 = vsyncadd [#allocation6], %s40
      %s43 = sshll.u32 [#allocation5], 4
      %s44 = int_to_ptr.vmem [resolvable:$true] %s43
      %46 = dma.hbm_to_vmem [thread:$0]  %s4, 16, %s44, [#allocation6]
    $region21: #{tpu_custom_call.1} parent=1 // pred_fallthru
      _
    // Predicated region
    $region22: #{tpu_custom_call.1} parent=1 // pred_check
      _
    $region23: #{tpu_custom_call.1} parent=1 // pred_check_branch
      %48 = sbr.rel (0) target = $region25
    $region24: #{tpu_custom_call.1} parent=1 // pred_region
      %s50 = ssub.s32 16, 16
      %51 = vsyncadd [#allocation6], %s50
      %s53 = sshll.u32 [#allocation7], 4
      %s54 = int_to_ptr.vmem [resolvable:$true] %s53
      %56 = dma.hbm_to_vmem [thread:$0]  %s5, 16, %s54, [#allocation6]
    $region25: #{tpu_custom_call.1} parent=1 // pred_fallthru
      _
    // Predicated region
    $region26: #{tpu_custom_call.1} parent=1 // pred_check
      _
    $region27: #{tpu_custom_call.1} parent=1 // pred_check_branch
      %58 = sbr.rel (0) target = $region29
    $region28: #{tpu_custom_call.1} parent=1 // pred_region
      _
    $region29: #{tpu_custom_call.1} parent=1 // pred_fallthru
      _
    // Predicated region
    $region30: #{tpu_custom_call.1} parent=1 // pred_check
      _
    $region31: #{tpu_custom_call.1} parent=1 // pred_check_branch
      %60 = sbr.rel (0) target = $region33
    $region32: #{tpu_custom_call.1} parent=1 // pred_region
      _
    $region33: #{tpu_custom_call.1} parent=1 // pred_fallthru
      _
    // Predicated region
    $region34: #{tpu_custom_call.1} parent=1 // pred_check
      _
    $region35: #{tpu_custom_call.1} parent=1 // pred_check_branch
      %62 = sbr.rel (0) target = $region37
    $region36: #{tpu_custom_call.1} parent=1 // pred_region
      %s64 = ssub.s32 16, 16
      %65 = vsyncadd [#allocation9], %s64
      %s67 = sshll.u32 [#allocation8], 4
      %s68 = int_to_ptr.vmem [resolvable:$true] %s67
      %70 = dma.hbm_to_vmem [thread:$0]  %s8, 16, %s68, [#allocation9]
    $region37: #{tpu_custom_call.1} parent=1 // pred_fallthru
      _
    // Predicated region
    $region38: #{tpu_custom_call.1} parent=1 // pred_check
      _
    $region39: #{tpu_custom_call.1} parent=1 // pred_check_branch
      %72 = sbr.rel (0) target = $region41
    $region40: #{tpu_custom_call.1} parent=1 // pred_region
      %s74 = ssub.s32 2048, 2048
      %75 = vsyncadd [#allocation9], %s74
      %s76 = sshll.u32 [#allocation10], 4
      %s77 = int_to_ptr.vmem [resolvable:$true] %s76
      %82 = dma.hbm_to_vmem [thread:$0]  %s9, 2048, %s77, [#allocation9], 128, 128, 8
    $region41: #{tpu_custom_call.1} parent=1 // pred_fallthru
      _
    // Predicated region
    $region42: #{tpu_custom_call.1} parent=1 // pred_check
      _
    $region43: #{tpu_custom_call.1} parent=1 // pred_check_branch
      %84 = sbr.rel (0) target = $region45
    $region44: #{tpu_custom_call.1} parent=1 // pred_region
      _
    $region45: #{tpu_custom_call.1} parent=1 // pred_fallthru
      _
    // Predicated region
    $region46: #{tpu_custom_call.1} parent=1 // pred_check
      _
    $region47: #{tpu_custom_call.1} parent=1 // pred_check_branch
      %86 = sbr.rel (0) target = $region49
    $region48: #{tpu_custom_call.1} parent=1 // pred_region
      _
    $region49: #{tpu_custom_call.1} parent=1 // pred_fallthru
      _
    // Predicated region
    $region50: #{tpu_custom_call.1} parent=1 // pred_check
      _
    $region51: #{tpu_custom_call.1} parent=1 // pred_check_branch
      %88 = sbr.rel (0) target = $region53
    $region52: #{tpu_custom_call.1} parent=1 // pred_region
      _
    $region53: #{tpu_custom_call.1} parent=1 // pred_fallthru
      _
    // Predicated region
    $region54: #{tpu_custom_call.1} parent=1 // pred_check
      _
    $region55: #{tpu_custom_call.1} parent=1 // pred_check_branch
      %90 = sbr.rel (0) target = $region57
    $region56: #{tpu_custom_call.1} parent=1 // pred_region
      %91 = dma.done [#allocation4], 16
    $region57: #{tpu_custom_call.1} parent=1 // pred_fallthru
      _
    // Predicated region
    $region58: #{tpu_custom_call.1} parent=1 // pred_check
      _
    $region59: #{tpu_custom_call.1} parent=1 // pred_check_branch
      %93 = sbr.rel (0) target = $region61
    $region60: #{tpu_custom_call.1} parent=1 // pred_region
      %94 = dma.done [#allocation6], 16
    $region61: #{tpu_custom_call.1} parent=1 // pred_fallthru
      _
    // Predicated region
    $region62: #{tpu_custom_call.1} parent=1 // pred_check
      _
    $region63: #{tpu_custom_call.1} parent=1 // pred_check_branch
      %96 = sbr.rel (0) target = $region65
    $region64: #{tpu_custom_call.1} parent=1 // pred_region
      %97 = dma.done [#allocation6], 16
    $region65: #{tpu_custom_call.1} parent=1 // pred_fallthru
      _
    // Predicated region
    $region66: #{tpu_custom_call.1} parent=1 // pred_check
      _
    $region67: #{tpu_custom_call.1} parent=1 // pred_check_branch
      %99 = sbr.rel (0) target = $region69
    $region68: #{tpu_custom_call.1} parent=1 // pred_region
      %100 = dma.done [#allocation9], 16
    $region69: #{tpu_custom_call.1} parent=1 // pred_fallthru
      _
    // Predicated region
    $region70: #{tpu_custom_call.1} parent=1 // pred_check
      _
    $region71: #{tpu_custom_call.1} parent=1 // pred_check_branch
      %102 = sbr.rel (0) target = $region73
    $region72: #{tpu_custom_call.1} parent=1 // pred_region
      %103 = dma.done [#allocation9], 2048
    $region73: #{tpu_custom_call.1} parent=1 // pred_fallthru
      _
    %p104 = scmp.eq.s32.totalorder 0, 0
    // Predicated region
    $region74: #{tpu_custom_call.1} parent=1 // pred_check
      %p105 = pneg %p104
    $region75: #{tpu_custom_call.1} parent=1 // pred_check_branch
      %107 = sbr.rel (%p105) target = $region77
    $region76: #{tpu_custom_call.1} parent=1 // pred_region
      %108 = vst [vmem:[#allocation2] sm:$0xff] 0.0
    $region77: #{tpu_custom_call.1} parent=1 // pred_fallthru
      _
    %v109 = vld [vmem:[%s0] sm:$0xff]
    %v110 = vld [vmem:[#allocation2] sm:$0xff]
    %v111 = vld [vmem:[%s2] sm:$0xff]
    %v112 = vld [vmem:[%s2 + $0x8] sm:$0xff]
    %v113 = vld [vmem:[%s2 + $0x10] sm:$0xff]
    %v114 = vld [vmem:[%s2 + $0x18] sm:$0xff]
    %vm115 = vcmask 261120
    %v117 = vsel %vm115, %v109, 0
    %119 = vmatprep.subr.mxu0 0.0
    %120 = vmatpush1.msra.mxu0 %v111
    %121 = vmatprep.subr.mxu0 0.0
    %122 = vmatpush1.msra.mxu0 %v112
    %123 = vmatprep.subr.mxu0 0.0
    %124 = vmatpush1.msra.mxu0 %v113
    %125 = vmatprep.subr.mxu0 0.0
    %126 = vmatpush1.msra.mxu0 %v114
    %127 = vmatprep.subr.mxu0 0.0
    %128 = vmatpush1.msra.mxu0 0.0
    %129 = vmatprep.subr.mxu0 0.0
    %130 = vmatpush1.msra.mxu0 0.0
    %131 = vmatprep.subr.mxu0 0.0
    %132 = vmatpush1.msra.mxu0 0.0
    %133 = vmatprep.subr.mxu0 0.0
    %134 = vmatpush1.msra.mxu0 0.0
    %135 = vmatprep.subr.mxu0 0.0
    %136 = vmatpush1.msra.mxu0 0.0
    %137 = vmatprep.subr.mxu0 0.0
    %138 = vmatpush1.msra.mxu0 0.0
    %139 = vmatprep.subr.mxu0 0.0
    %140 = vmatpush1.msra.mxu0 0.0
    %141 = vmatprep.subr.mxu0 0.0
    %142 = vmatpush1.msra.mxu0 0.0
    %143 = vmatprep.subr.mxu0 0.0
    %144 = vmatpush1.msra.mxu0 0.0
    %145 = vmatprep.subr.mxu0 0.0
    %146 = vmatpush1.msra.mxu0 0.0
    %147 = vmatprep.subr.mxu0 0.0
    %148 = vmatpush1.msra.mxu0 0.0
    %149 = vmatprep.subr.mxu0 0.0
    %150 = vmatpush1.msra.mxu0 0.0
    %151 = vmatprep.subr.mxu0 0.0
    %152 = vmatpush1.msra.mxu0 0.0
    %153 = vmatprep.subr.mxu0 0.0
    %154 = vmatpush1.msra.mxu0 0.0
    %155 = vmatprep.subr.mxu0 0.0
    %156 = vmatpush1.msra.mxu0 0.0
    %157 = vmatprep.subr.mxu0 0.0
    %158 = vmatpush1.msra.mxu0 0.0
    %159 = vmatprep.subr.mxu0 0.0
    %160 = vmatpush1.msra.mxu0 0.0
    %161 = vmatprep.subr.mxu0 0.0
    %162 = vmatpush1.msra.mxu0 0.0
    %163 = vmatprep.subr.mxu0 0.0
    %164 = vmatpush1.msra.mxu0 0.0
    %165 = vmatprep.subr.mxu0 0.0
    %166 = vmatpush1.msra.mxu0 0.0
    %167 = vmatprep.subr.mxu0 0.0
    %168 = vmatpush1.msra.mxu0 0.0
    %169 = vmatprep.subr.mxu0 0.0
    %170 = vmatpush1.msra.mxu0 0.0
    %171 = vmatprep.subr.mxu0 0.0
    %172 = vmatpush1.msra.mxu0 0.0
    %173 = vmatprep.subr.mxu0 0.0
    %174 = vmatpush1.msra.mxu0 0.0
    %175 = vmatprep.subr.mxu0 0.0
    %176 = vmatpush1.msra.mxu0 0.0
    %177 = vmatprep.subr.mxu0 0.0
    %178 = vmatpush1.msra.mxu0 0.0
    %179 = vmatprep.subr.mxu0 0.0
    %180 = vmatpush1.msra.mxu0 0.0
    %181 = vmatprep.subr.mxu0 0.0
    %182 = vmatpush1.msra.mxu0 0.0
    %183 = vmatprep.mubr.f32.mxu0 0.0
    %184 = vmatmul.mubr.f32.gmra.mrb[0].mxu0 %v117
    %v185 = vpop.f32.mrb[0].mxu0
    %v186 = vadd.f32 0.0, %v185
    %v187 = vpop.f32.mrb[0].mxu0
    %188 = vdwg.mxu0
    %v189 = vadd.f32 %v110, %v186
    %190 = vst [vmem:[#allocation2] sm:$0xff] %v189
    // Predicated region
    $region78: #{tpu_custom_call.1} parent=1 // pred_check
      %p191 = pneg %p104
    $region79: #{tpu_custom_call.1} parent=1 // pred_check_branch
      %193 = sbr.rel (%p191) target = $region81
    $region80: #{tpu_custom_call.1} parent=1 // pred_region
      %v194 = vld [vmem:[#allocation2] sm:$0xff]
      %v195 = vld [vmem:[#allocation3] sm:$0x1]
      %v197 = vlaneseq
      %v198 = vshrl.u32 %v197, 7
      %v199 = vsub.s32 0, %v198
      %v200 = vrot.slane %v195, %v199
      %v202 = vadd.f32 %v194, %v200
      %203 = vadd.xlane.f32.xlu0 %v202
      %v204 = vpop.xlane.xlu0 %203
      %v205 = vmul.f32 %v204, 0.015625
      %v206 = vlaneseq
      %v207 = vand.u32 %v206, 127
      %vm208 = vcmp.lt.s32.totalorder %v207, 64
      %v209 = vsub.f32 %v202, %v205
      %v210 = vsel %vm208, %v209, 0.0
      %v211 = vmul.f32 %v210, %v210
      %212 = vadd.xlane.f32.xlu0 %v211
      %v213 = vpop.xlane.xlu0 %212
      %v214 = vmul.f32 %v213, 0.015625
      %v215 = vadd.f32 %v214, 1e-05
      %v216 = vrsqrt.pop %v215
      %v217 = vmul.f32 %v210, %v216
      %v218 = vld [vmem:[#allocation5] sm:$0x1]
      %v220 = vlaneseq
      %v221 = vshrl.u32 %v220, 7
      %v222 = vsub.s32 0, %v221
      %v223 = vrot.slane %v218, %v222
      %v225 = vmul.f32 %v217, %v223
      %v226 = vld [vmem:[#allocation7] sm:$0x1]
      %v228 = vlaneseq
      %v229 = vshrl.u32 %v228, 7
      %v230 = vsub.s32 0, %v229
      %v231 = vrot.slane %v226, %v230
      %v233 = vadd.f32 %v225, %v231
      %v234 = vtanh.pop %v233
      %v235 = vld [vmem:[%s6] sm:$0xff]
      %v236 = vld [vmem:[%s6 + $0x8] sm:$0xff]
      %v237 = vld [vmem:[%s6 + $0x10] sm:$0xff]
      %v238 = vld [vmem:[%s6 + $0x18] sm:$0xff]
      %v239 = vld [vmem:[%s6 + $0x20] sm:$0xff]
      %v240 = vld [vmem:[%s6 + $0x28] sm:$0xff]
      %v241 = vld [vmem:[%s6 + $0x30] sm:$0xff]
      %v242 = vld [vmem:[%s6 + $0x38] sm:$0xff]
      %v243 = vld [vmem:[%s6 + $0x40] sm:$0xff]
      %v244 = vld [vmem:[%s6 + $0x48] sm:$0xff]
      %v245 = vld [vmem:[%s6 + $0x50] sm:$0xff]
      %v246 = vld [vmem:[%s6 + $0x58] sm:$0xff]
      %v247 = vld [vmem:[%s6 + $0x60] sm:$0xff]
      %v248 = vld [vmem:[%s6 + $0x68] sm:$0xff]
      %v249 = vld [vmem:[%s6 + $0x70] sm:$0xff]
      %v250 = vld [vmem:[%s6 + $0x78] sm:$0xff]
      %v251 = vld [vmem:[#allocation8] sm:$0x1]
      %v253 = vlaneseq
      %v254 = vshrl.u32 %v253, 7
      %v255 = vsub.s32 0, %v254
      %v256 = vrot.slane %v251, %v255
      %258 = vmatprep.subr.mxu0 0.0
      %259 = vmatpush1.msra.mxu0 %v235
      %260 = vmatprep.subr.mxu0 0.0
      %261 = vmatpush1.msra.mxu0 %v236
      %262 = vmatprep.subr.mxu0 0.0
      %263 = vmatpush1.msra.mxu0 %v237
      %264 = vmatprep.subr.mxu0 0.0
      %265 = vmatpush1.msra.mxu0 %v238
      %266 = vmatprep.subr.mxu0 0.0
      %267 = vmatpush1.msra.mxu0 %v239
      %268 = vmatprep.subr.mxu0 0.0
      %269 = vmatpush1.msra.mxu0 %v240
      %270 = vmatprep.subr.mxu0 0.0
      %271 = vmatpush1.msra.mxu0 %v241
      %272 = vmatprep.subr.mxu0 0.0
      %273 = vmatpush1.msra.mxu0 %v242
      %274 = vmatprep.subr.mxu0 0.0
      %275 = vmatpush1.msra.mxu0 %v243
      %276 = vmatprep.subr.mxu0 0.0
      %277 = vmatpush1.msra.mxu0 %v244
      %278 = vmatprep.subr.mxu0 0.0
      %279 = vmatpush1.msra.mxu0 %v245
      %280 = vmatprep.subr.mxu0 0.0
      %281 = vmatpush1.msra.mxu0 %v246
      %282 = vmatprep.subr.mxu0 0.0
      %283 = vmatpush1.msra.mxu0 %v247
      %284 = vmatprep.subr.mxu0 0.0
      %285 = vmatpush1.msra.mxu0 %v248
      %286 = vmatprep.subr.mxu0 0.0
      %287 = vmatpush1.msra.mxu0 %v249
      %288 = vmatprep.subr.mxu0 0.0
      %289 = vmatpush1.msra.mxu0 %v250
      %290 = vmatprep.subr.mxu0 0.0
      %291 = vmatpush1.msra.mxu0 0.0
      %292 = vmatprep.subr.mxu0 0.0
      %293 = vmatpush1.msra.mxu0 0.0
      %294 = vmatprep.subr.mxu0 0.0
      %295 = vmatpush1.msra.mxu0 0.0
      %296 = vmatprep.subr.mxu0 0.0
      %297 = vmatpush1.msra.mxu0 0.0
      %298 = vmatprep.subr.mxu0 0.0
      %299 = vmatpush1.msra.mxu0 0.0
      %300 = vmatprep.subr.mxu0 0.0
      %301 = vmatpush1.msra.mxu0 0.0
      %302 = vmatprep.subr.mxu0 0.0
      %303 = vmatpush1.msra.mxu0 0.0
      %304 = vmatprep.subr.mxu0 0.0
      %305 = vmatpush1.msra.mxu0 0.0
      %306 = vmatprep.subr.mxu0 0.0
      %307 = vmatpush1.msra.mxu0 0.0
      %308 = vmatprep.subr.mxu0 0.0
      %309 = vmatpush1.msra.mxu0 0.0
      %310 = vmatprep.subr.mxu0 0.0
      %311 = vmatpush1.msra.mxu0 0.0
      %312 = vmatprep.subr.mxu0 0.0
      %313 = vmatpush1.msra.mxu0 0.0
      %314 = vmatprep.subr.mxu0 0.0
      %315 = vmatpush1.msra.mxu0 0.0
      %316 = vmatprep.subr.mxu0 0.0
      %317 = vmatpush1.msra.mxu0 0.0
      %318 = vmatprep.subr.mxu0 0.0
      %319 = vmatpush1.msra.mxu0 0.0
      %320 = vmatprep.subr.mxu0 0.0
      %321 = vmatpush1.msra.mxu0 0.0
      %322 = vmatprep.mubr.f32.mxu0 0.0
      %323 = vmatmul.mubr.f32.gmra.mrb[0].mxu0 %v234
      %v324 = vpop.f32.mrb[0].mxu0
      %v325 = vadd.f32 %v256, %v324
      %v326 = vpop.f32.mrb[0].mxu0
      %327 = vdwg.mxu0
      %v328 = vld [vmem:[%s1] sm:$0xff]
      %v329 = vld [vmem:[%s7] sm:$0xf]
      %331 = vset.pattern.permute.xlu0 0
      %332 = vperm.xlu0 %331, %v328
      %v333 = vpop.permute.xlu0 %332
      %v335 = vlaneseq
      %v336 = vshrl.u32 %v335, 7
      %v337 = vsub.s32 0, %v336
      %v338 = vrot.slane %v329, %v337
      %v339 = vmul.f32 %v333, %v338
      %v340 = vadd.f32 %v325, %v339
      %341 = vset.pattern.permute.xlu0 1
      %342 = vperm.xlu0 %341, %v328
      %v343 = vpop.permute.xlu0 %342
      %v345 = vlaneseq
      %v346 = vshrl.u32 %v345, 7
      %v347 = vsub.s32 1, %v346
      %v348 = vrot.slane %v329, %v347
      %v349 = vmul.f32 %v343, %v348
      %v350 = vadd.f32 %v340, %v349
      %351 = vset.pattern.permute.xlu0 2
      %352 = vperm.xlu0 %351, %v328
      %v353 = vpop.permute.xlu0 %352
      %v355 = vlaneseq
      %v356 = vshrl.u32 %v355, 7
      %v357 = vsub.s32 2, %v356
      %v358 = vrot.slane %v329, %v357
      %v359 = vmul.f32 %v353, %v358
      %v360 = vadd.f32 %v350, %v359
      %361 = vset.pattern.permute.xlu0 3
      %362 = vperm.xlu0 %361, %v328
      %v363 = vpop.permute.xlu0 %362
      %v365 = vlaneseq
      %v366 = vshrl.u32 %v365, 7
      %v367 = vsub.s32 3, %v366
      %v368 = vrot.slane %v329, %v367
      %v369 = vmul.f32 %v363, %v368
      %v370 = vadd.f32 %v360, %v369
      %v371 = vmax.f32 %v370, 0.0
      %v372 = vld [vmem:[#allocation10] sm:$0xff]
      %v373 = vld [vmem:[#allocation10 + $0x8] sm:$0xff]
      %v374 = vld [vmem:[#allocation10 + $0x10] sm:$0xff]
      %v375 = vld [vmem:[#allocation10 + $0x18] sm:$0xff]
      %v376 = vld [vmem:[#allocation10 + $0x20] sm:$0xff]
      %v377 = vld [vmem:[#allocation10 + $0x28] sm:$0xff]
      %v378 = vld [vmem:[#allocation10 + $0x30] sm:$0xff]
      %v379 = vld [vmem:[#allocation10 + $0x38] sm:$0xff]
      %v380 = vld [vmem:[%s10] sm:$0x1]
      %v382 = vlaneseq
      %v383 = vshrl.u32 %v382, 7
      %v384 = vsub.s32 0, %v383
      %v385 = vrot.slane %v380, %v384
      %vm387 = vcmask 523264
      %v389 = vsel %vm387, %v371, 0
      %391 = vmatprep.subr.mxu0 0.0
      %392 = vmatpush1.msra.mxu0 %v372
      %393 = vmatprep.subr.mxu0 0.0
      %394 = vmatpush1.msra.mxu0 %v373
      %395 = vmatprep.subr.mxu0 0.0
      %396 = vmatpush1.msra.mxu0 %v374
      %397 = vmatprep.subr.mxu0 0.0
      %398 = vmatpush1.msra.mxu0 %v375
      %399 = vmatprep.subr.mxu0 0.0
      %400 = vmatpush1.msra.mxu0 %v376
      %401 = vmatprep.subr.mxu0 0.0
      %402 = vmatpush1.msra.mxu0 %v377
      %403 = vmatprep.subr.mxu0 0.0
      %404 = vmatpush1.msra.mxu0 %v378
      %405 = vmatprep.subr.mxu0 0.0
      %406 = vmatpush1.msra.mxu0 %v379
      %407 = vmatprep.subr.mxu0 0.0
      %408 = vmatpush1.msra.mxu0 0.0
      %409 = vmatprep.subr.mxu0 0.0
      %410 = vmatpush1.msra.mxu0 0.0
      %411 = vmatprep.subr.mxu0 0.0
      %412 = vmatpush1.msra.mxu0 0.0
      %413 = vmatprep.subr.mxu0 0.0
      %414 = vmatpush1.msra.mxu0 0.0
      %415 = vmatprep.subr.mxu0 0.0
      %416 = vmatpush1.msra.mxu0 0.0
      %417 = vmatprep.subr.mxu0 0.0
      %418 = vmatpush1.msra.mxu0 0.0
      %419 = vmatprep.subr.mxu0 0.0
      %420 = vmatpush1.msra.mxu0 0.0
      %421 = vmatprep.subr.mxu0 0.0
      %422 = vmatpush1.msra.mxu0 0.0
      %423 = vmatprep.subr.mxu0 0.0
      %424 = vmatpush1.msra.mxu0 0.0
      %425 = vmatprep.subr.mxu0 0.0
      %426 = vmatpush1.msra.mxu0 0.0
      %427 = vmatprep.subr.mxu0 0.0
      %428 = vmatpush1.msra.mxu0 0.0
      %429 = vmatprep.subr.mxu0 0.0
      %430 = vmatpush1.msra.mxu0 0.0
      %431 = vmatprep.subr.mxu0 0.0
      %432 = vmatpush1.msra.mxu0 0.0
      %433 = vmatprep.subr.mxu0 0.0
      %434 = vmatpush1.msra.mxu0 0.0
      %435 = vmatprep.subr.mxu0 0.0
      %436 = vmatpush1.msra.mxu0 0.0
      %437 = vmatprep.subr.mxu0 0.0
      %438 = vmatpush1.msra.mxu0 0.0
      %439 = vmatprep.subr.mxu0 0.0
      %440 = vmatpush1.msra.mxu0 0.0
      %441 = vmatprep.subr.mxu0 0.0
      %442 = vmatpush1.msra.mxu0 0.0
      %443 = vmatprep.subr.mxu0 0.0
      %444 = vmatpush1.msra.mxu0 0.0
      %445 = vmatprep.subr.mxu0 0.0
      %446 = vmatpush1.msra.mxu0 0.0
      %447 = vmatprep.subr.mxu0 0.0
      %448 = vmatpush1.msra.mxu0 0.0
      %449 = vmatprep.subr.mxu0 0.0
      %450 = vmatpush1.msra.mxu0 0.0
      %451 = vmatprep.subr.mxu0 0.0
      %452 = vmatpush1.msra.mxu0 0.0
      %453 = vmatprep.subr.mxu0 0.0
      %454 = vmatpush1.msra.mxu0 0.0
      %455 = vmatprep.mubr.f32.mxu0 0.0
      %456 = vmatmul.mubr.f32.gmra.mrb[0].mxu0 %v389
      %v457 = vpop.f32.mrb[0].mxu0
      %v458 = vadd.f32 %v385, %v457
      %v459 = vpop.f32.mrb[0].mxu0
      %460 = vdwg.mxu0
      %v461 = vmax.f32 %v458, 0.0
      %s462 = scalar_lea.vmem [#allocation10], 64
      %v463 = vld [vmem:[%s462] sm:$0xff]
      %v464 = vld [vmem:[%s462 + $0x8] sm:$0xff]
      %v465 = vld [vmem:[%s462 + $0x10] sm:$0xff]
      %v466 = vld [vmem:[%s462 + $0x18] sm:$0xff]
      %v467 = vld [vmem:[%s462 + $0x20] sm:$0xff]
      %v468 = vld [vmem:[%s462 + $0x28] sm:$0xff]
      %v469 = vld [vmem:[%s462 + $0x30] sm:$0xff]
      %v470 = vld [vmem:[%s462 + $0x38] sm:$0xff]
      %s471 = scalar_lea.vmem %s10, 1
      %v472 = vld [vmem:[%s471] sm:$0x1]
      %v474 = vlaneseq
      %v475 = vshrl.u32 %v474, 7
      %v476 = vsub.s32 0, %v475
      %v477 = vrot.slane %v472, %v476
      %479 = vrot.lane.b32.xlu0 %v371, 64
      %v480 = vpop.permute.xlu0 %479
      %v481 = vsel %vm387, %v480, 0
      %483 = vmatprep.subr.mxu0 0.0
      %484 = vmatpush1.msra.mxu0 %v463
      %485 = vmatprep.subr.mxu0 0.0
      %486 = vmatpush1.msra.mxu0 %v464
      %487 = vmatprep.subr.mxu0 0.0
      %488 = vmatpush1.msra.mxu0 %v465
      %489 = vmatprep.subr.mxu0 0.0
      %490 = vmatpush1.msra.mxu0 %v466
      %491 = vmatprep.subr.mxu0 0.0
      %492 = vmatpush1.msra.mxu0 %v467
      %493 = vmatprep.subr.mxu0 0.0
      %494 = vmatpush1.msra.mxu0 %v468
      %495 = vmatprep.subr.mxu0 0.0
      %496 = vmatpush1.msra.mxu0 %v469
      %497 = vmatprep.subr.mxu0 0.0
      %498 = vmatpush1.msra.mxu0 %v470
      %499 = vmatprep.subr.mxu0 0.0
      %500 = vmatpush1.msra.mxu0 0.0
      %501 = vmatprep.subr.mxu0 0.0
      %502 = vmatpush1.msra.mxu0 0.0
      %503 = vmatprep.subr.mxu0 0.0
      %504 = vmatpush1.msra.mxu0 0.0
      %505 = vmatprep.subr.mxu0 0.0
      %506 = vmatpush1.msra.mxu0 0.0
      %507 = vmatprep.subr.mxu0 0.0
      %508 = vmatpush1.msra.mxu0 0.0
      %509 = vmatprep.subr.mxu0 0.0
      %510 = vmatpush1.msra.mxu0 0.0
      %511 = vmatprep.subr.mxu0 0.0
      %512 = vmatpush1.msra.mxu0 0.0
      %513 = vmatprep.subr.mxu0 0.0
      %514 = vmatpush1.msra.mxu0 0.0
      %515 = vmatprep.subr.mxu0 0.0
      %516 = vmatpush1.msra.mxu0 0.0
      %517 = vmatprep.subr.mxu0 0.0
      %518 = vmatpush1.msra.mxu0 0.0
      %519 = vmatprep.subr.mxu0 0.0
      %520 = vmatpush1.msra.mxu0 0.0
      %521 = vmatprep.subr.mxu0 0.0
      %522 = vmatpush1.msra.mxu0 0.0
      %523 = vmatprep.subr.mxu0 0.0
      %524 = vmatpush1.msra.mxu0 0.0
      %525 = vmatprep.subr.mxu0 0.0
      %526 = vmatpush1.msra.mxu0 0.0
      %527 = vmatprep.subr.mxu0 0.0
      %528 = vmatpush1.msra.mxu0 0.0
      %529 = vmatprep.subr.mxu0 0.0
      %530 = vmatpush1.msra.mxu0 0.0
      %531 = vmatprep.subr.mxu0 0.0
      %532 = vmatpush1.msra.mxu0 0.0
      %533 = vmatprep.subr.mxu0 0.0
      %534 = vmatpush1.msra.mxu0 0.0
      %535 = vmatprep.subr.mxu0 0.0
      %536 = vmatpush1.msra.mxu0 0.0
      %537 = vmatprep.subr.mxu0 0.0
      %538 = vmatpush1.msra.mxu0 0.0
      %539 = vmatprep.subr.mxu0 0.0
      %540 = vmatpush1.msra.mxu0 0.0
      %541 = vmatprep.subr.mxu0 0.0
      %542 = vmatpush1.msra.mxu0 0.0
      %543 = vmatprep.subr.mxu0 0.0
      %544 = vmatpush1.msra.mxu0 0.0
      %545 = vmatprep.subr.mxu0 0.0
      %546 = vmatpush1.msra.mxu0 0.0
      %547 = vmatprep.mubr.f32.mxu0 0.0
      %548 = vmatmul.mubr.f32.gmra.mrb[0].mxu0 %v481
      %v549 = vpop.f32.mrb[0].mxu0
      %v550 = vadd.f32 %v477, %v549
      %v551 = vpop.f32.mrb[0].mxu0
      %552 = vdwg.mxu0
      %v553 = vmax.f32 %v550, 0.0
      %v554 = vld [vmem:[%s11] sm:$0xff]
      %v555 = vld [vmem:[%s11 + $0x8] sm:$0xff]
      %v556 = vld [vmem:[%s11 + $0x10] sm:$0xff]
      %v557 = vld [vmem:[%s11 + $0x18] sm:$0xff]
      %v558 = vld [vmem:[%s11 + $0x20] sm:$0xff]
      %v559 = vld [vmem:[%s11 + $0x28] sm:$0xff]
      %v560 = vld [vmem:[%s11 + $0x30] sm:$0xff]
      %v561 = vld [vmem:[%s11 + $0x38] sm:$0xff]
      %v562 = vld [vmem:[%s12] sm:$0x1]
      %v564 = vlaneseq
      %v565 = vshrl.u32 %v564, 7
      %v566 = vsub.s32 0, %v565
      %v567 = vrot.slane %v562, %v566
      %v570 = vsel %vm387, %v461, 0
      %572 = vmatprep.subr.mxu0 0.0
      %573 = vmatpush1.msra.mxu0 %v554
      %574 = vmatprep.subr.mxu0 0.0
      %575 = vmatpush1.msra.mxu0 %v555
      %576 = vmatprep.subr.mxu0 0.0
      %577 = vmatpush1.msra.mxu0 %v556
      %578 = vmatprep.subr.mxu0 0.0
      %579 = vmatpush1.msra.mxu0 %v557
      %580 = vmatprep.subr.mxu0 0.0
      %581 = vmatpush1.msra.mxu0 %v558
      %582 = vmatprep.subr.mxu0 0.0
      %583 = vmatpush1.msra.mxu0 %v559
      %584 = vmatprep.subr.mxu0 0.0
      %585 = vmatpush1.msra.mxu0 %v560
      %586 = vmatprep.subr.mxu0 0.0
      %587 = vmatpush1.msra.mxu0 %v561
      %588 = vmatprep.subr.mxu0 0.0
      %589 = vmatpush1.msra.mxu0 0.0
      %590 = vmatprep.subr.mxu0 0.0
      %591 = vmatpush1.msra.mxu0 0.0
      %592 = vmatprep.subr.mxu0 0.0
      %593 = vmatpush1.msra.mxu0 0.0
      %594 = vmatprep.subr.mxu0 0.0
      %595 = vmatpush1.msra.mxu0 0.0
      %596 = vmatprep.subr.mxu0 0.0
      %597 = vmatpush1.msra.mxu0 0.0
      %598 = vmatprep.subr.mxu0 0.0
      %599 = vmatpush1.msra.mxu0 0.0
      %600 = vmatprep.subr.mxu0 0.0
      %601 = vmatpush1.msra.mxu0 0.0
      %602 = vmatprep.subr.mxu0 0.0
      %603 = vmatpush1.msra.mxu0 0.0
      %604 = vmatprep.subr.mxu0 0.0
      %605 = vmatpush1.msra.mxu0 0.0
      %606 = vmatprep.subr.mxu0 0.0
      %607 = vmatpush1.msra.mxu0 0.0
      %608 = vmatprep.subr.mxu0 0.0
      %609 = vmatpush1.msra.mxu0 0.0
      %610 = vmatprep.subr.mxu0 0.0
      %611 = vmatpush1.msra.mxu0 0.0
      %612 = vmatprep.subr.mxu0 0.0
      %613 = vmatpush1.msra.mxu0 0.0
      %614 = vmatprep.subr.mxu0 0.0
      %615 = vmatpush1.msra.mxu0 0.0
      %616 = vmatprep.subr.mxu0 0.0
      %617 = vmatpush1.msra.mxu0 0.0
      %618 = vmatprep.subr.mxu0 0.0
      %619 = vmatpush1.msra.mxu0 0.0
      %620 = vmatprep.subr.mxu0 0.0
      %621 = vmatpush1.msra.mxu0 0.0
      %622 = vmatprep.subr.mxu0 0.0
      %623 = vmatpush1.msra.mxu0 0.0
      %624 = vmatprep.subr.mxu0 0.0
      %625 = vmatpush1.msra.mxu0 0.0
      %626 = vmatprep.subr.mxu0 0.0
      %627 = vmatpush1.msra.mxu0 0.0
      %628 = vmatprep.subr.mxu0 0.0
      %629 = vmatpush1.msra.mxu0 0.0
      %630 = vmatprep.subr.mxu0 0.0
      %631 = vmatpush1.msra.mxu0 0.0
      %632 = vmatprep.subr.mxu0 0.0
      %633 = vmatpush1.msra.mxu0 0.0
      %634 = vmatprep.subr.mxu0 0.0
      %635 = vmatpush1.msra.mxu0 0.0
      %636 = vmatprep.mubr.f32.mxu0 0.0
      %637 = vmatmul.mubr.f32.gmra.mrb[0].mxu0 %v570
      %v638 = vpop.f32.mrb[0].mxu0
      %v639 = vadd.f32 %v567, %v638
      %v640 = vpop.f32.mrb[0].mxu0
      %641 = vdwg.mxu0
      %s642 = scalar_lea.vmem %s11, 64
      %v643 = vld [vmem:[%s642] sm:$0xff]
      %v644 = vld [vmem:[%s642 + $0x8] sm:$0xff]
      %v645 = vld [vmem:[%s642 + $0x10] sm:$0xff]
      %v646 = vld [vmem:[%s642 + $0x18] sm:$0xff]
      %v647 = vld [vmem:[%s642 + $0x20] sm:$0xff]
      %v648 = vld [vmem:[%s642 + $0x28] sm:$0xff]
      %v649 = vld [vmem:[%s642 + $0x30] sm:$0xff]
      %v650 = vld [vmem:[%s642 + $0x38] sm:$0xff]
      %s651 = scalar_lea.vmem %s12, 1
      %v652 = vld [vmem:[%s651] sm:$0x1]
      %v654 = vlaneseq
      %v655 = vshrl.u32 %v654, 7
      %v656 = vsub.s32 0, %v655
      %v657 = vrot.slane %v652, %v656
      %v660 = vsel %vm387, %v553, 0
      %662 = vmatprep.subr.mxu0 0.0
      %663 = vmatpush1.msra.mxu0 %v643
      %664 = vmatprep.subr.mxu0 0.0
      %665 = vmatpush1.msra.mxu0 %v644
      %666 = vmatprep.subr.mxu0 0.0
      %667 = vmatpush1.msra.mxu0 %v645
      %668 = vmatprep.subr.mxu0 0.0
      %669 = vmatpush1.msra.mxu0 %v646
      %670 = vmatprep.subr.mxu0 0.0
      %671 = vmatpush1.msra.mxu0 %v647
      %672 = vmatprep.subr.mxu0 0.0
      %673 = vmatpush1.msra.mxu0 %v648
      %674 = vmatprep.subr.mxu0 0.0
      %675 = vmatpush1.msra.mxu0 %v649
      %676 = vmatprep.subr.mxu0 0.0
      %677 = vmatpush1.msra.mxu0 %v650
      %678 = vmatprep.subr.mxu0 0.0
      %679 = vmatpush1.msra.mxu0 0.0
      %680 = vmatprep.subr.mxu0 0.0
      %681 = vmatpush1.msra.mxu0 0.0
      %682 = vmatprep.subr.mxu0 0.0
      %683 = vmatpush1.msra.mxu0 0.0
      %684 = vmatprep.subr.mxu0 0.0
      %685 = vmatpush1.msra.mxu0 0.0
      %686 = vmatprep.subr.mxu0 0.0
      %687 = vmatpush1.msra.mxu0 0.0
      %688 = vmatprep.subr.mxu0 0.0
      %689 = vmatpush1.msra.mxu0 0.0
      %690 = vmatprep.subr.mxu0 0.0
      %691 = vmatpush1.msra.mxu0 0.0
      %692 = vmatprep.subr.mxu0 0.0
      %693 = vmatpush1.msra.mxu0 0.0
      %694 = vmatprep.subr.mxu0 0.0
      %695 = vmatpush1.msra.mxu0 0.0
      %696 = vmatprep.subr.mxu0 0.0
      %697 = vmatpush1.msra.mxu0 0.0
      %698 = vmatprep.subr.mxu0 0.0
      %699 = vmatpush1.msra.mxu0 0.0
      %700 = vmatprep.subr.mxu0 0.0
      %701 = vmatpush1.msra.mxu0 0.0
      %702 = vmatprep.subr.mxu0 0.0
      %703 = vmatpush1.msra.mxu0 0.0
      %704 = vmatprep.subr.mxu0 0.0
      %705 = vmatpush1.msra.mxu0 0.0
      %706 = vmatprep.subr.mxu0 0.0
      %707 = vmatpush1.msra.mxu0 0.0
      %708 = vmatprep.subr.mxu0 0.0
      %709 = vmatpush1.msra.mxu0 0.0
      %710 = vmatprep.subr.mxu0 0.0
      %711 = vmatpush1.msra.mxu0 0.0
      %712 = vmatprep.subr.mxu0 0.0
      %713 = vmatpush1.msra.mxu0 0.0
      %714 = vmatprep.subr.mxu0 0.0
      %715 = vmatpush1.msra.mxu0 0.0
      %716 = vmatprep.subr.mxu0 0.0
      %717 = vmatpush1.msra.mxu0 0.0
      %718 = vmatprep.subr.mxu0 0.0
      %719 = vmatpush1.msra.mxu0 0.0
      %720 = vmatprep.subr.mxu0 0.0
      %721 = vmatpush1.msra.mxu0 0.0
      %722 = vmatprep.subr.mxu0 0.0
      %723 = vmatpush1.msra.mxu0 0.0
      %724 = vmatprep.subr.mxu0 0.0
      %725 = vmatpush1.msra.mxu0 0.0
      %726 = vmatprep.mubr.f32.mxu0 0.0
      %727 = vmatmul.mubr.f32.gmra.mrb[0].mxu0 %v660
      %v728 = vpop.f32.mrb[0].mxu0
      %v729 = vadd.f32 %v657, %v728
      %v730 = vpop.f32.mrb[0].mxu0
      %731 = vdwg.mxu0
      %733 = vrot.lane.b32.xlu0 %v729, 1
      %v734 = vpop.permute.xlu0 %733
      %vm736 = vcmask 7168
      %v737 = vsel %vm736, %v639, %v734
      %vm738 = vcmask 15360
      %739 = vst.msk [vmem:[%s13] sm:$0xff] %vm738, %v737
    $region81: #{tpu_custom_call.1} parent=1 // pred_fallthru
      _
    // Predicated region
    $region82: #{tpu_custom_call.1} parent=1 // pred_check
      _
    $region83: #{tpu_custom_call.1} parent=1 // pred_check_branch
      %741 = sbr.rel (0) target = $region85
    $region84: #{tpu_custom_call.1} parent=1 // pred_region
      _
    $region85: #{tpu_custom_call.1} parent=1 // pred_fallthru
      _
    // Predicated region
    $region86: #{tpu_custom_call.1} parent=1 // pred_check
      _
    $region87: #{tpu_custom_call.1} parent=1 // pred_check_branch
      %743 = sbr.rel (0) target = $region89
    $region88: #{tpu_custom_call.1} parent=1 // pred_region
      _
    $region89: #{tpu_custom_call.1} parent=1 // pred_fallthru
      _
    %744 = vsyncpa [#allocation4], 1
    %745 = vsyncpa [#allocation6], 1
    %746 = vsyncpa [#allocation9], 1

</llo_original>
